<compile_context>
chip_gen: v7x
topology: tpu7x:2x2x1
jax: 0.10.0
libtpu: 0.0.40
codegen_flags: <defaults>
</compile_context>

<pallas_src>
import jax
import jax.numpy as jnp
from jax import lax
from jax.experimental import pallas as pl
from jax.experimental.pallas import tpu as pltpu


# ----------------------------------------------------------------------------
# Pallas kernel: per-scale fused (1x1 conv -> folded BN -> ReLU)* -> max-over-K
# ----------------------------------------------------------------------------
def _make_scale_kernel(num_layers, nsample, tile_p):
    def kernel(x_ref, *refs):
        # x_ref: (Cin, K*tile_p) bf16, lane layout = [k0|p0..p_tile, k1|..., ...]
        out_ref = refs[-1]
        prm = refs[:-1]
        h = x_ref[...]
        for j in range(num_layers):
            w_t = prm[2 * j][...]                      # (Ci_j, Co_j) bf16, pre-transposed
            b = prm[2 * j + 1][...]                    # (Co_j, 1)   f32
            # One MXU dot per layer over the full K*tile_p lane stream.
            z = lax.dot_general(
                w_t, h,
                dimension_numbers=(((0,), (0,)), ((), ())),
                preferred_element_type=jnp.float32)    # (Co_j, K*tile_p) f32
            z = jnp.maximum(z + b, 0.0)                # folded BN bias + ReLU
            h = z.astype(jnp.bfloat16) if j + 1 < num_layers else z
        # Max over K: K-1 elementwise maxima over lane-aligned tile_p-wide slices.
        acc = h[:, :tile_p]
        for k in range(1, nsample):
            acc = jnp.maximum(acc, h[:, k * tile_p:(k + 1) * tile_p])
        out_ref[...] = acc                             # (Cout, tile_p) f32, lane-dense
    return kernel


def _choose_tile_p(p, cin, nsample, cout):
    """Pick the lane tile over the point axis from a per-tile VMEM budget."""
    p_min = ((p + 127) // 128) * 128
    budget = 20 * 1024 * 1024

    def footprint(t):
        x_bytes = 2 * cin * nsample * t * 2     # double-buffered bf16 input block
        act_bytes = cout * nsample * t * 6      # f32 + bf16 inter-layer temporaries
        out_bytes = 2 * cout * t * 4
        return x_bytes + act_bytes + out_bytes

    tile = 1024 if cout <= 64 else (512 if cout < 128 else 256)
    while tile > 128 and footprint(tile) > budget:
        tile //= 2
    # Prefer >= 2 grid steps when P allows (megacore balance on v7x).
    while tile > 128 and p_min < 2 * tile:
        tile //= 2
    tile = max(128, min(tile, p_min))
    vmem_limit = int(min(max(32 * 1024 * 1024, int(1.5 * footprint(tile)) + (2 << 20)),
                         64 * 1024 * 1024))
    return tile, vmem_limit


def _scale_mlp_max(x2d, w_list, b_list, cout, nsample, tile_p, p_pad, vmem_limit_bytes):
    """x2d: [Cin, n_tiles*K*tile_p] bf16 -> [Cout, p_pad] f32."""
    cin, g = x2d.shape
    num_layers = len(w_list)
    n_tiles = p_pad // tile_p
    assert g == n_tiles * nsample * tile_p

    in_specs = [pl.BlockSpec((cin, nsample * tile_p), lambda i: (0, i))]
    args = [x2d]
    for w, b in zip(w_list, b_list):
        in_specs.append(pl.BlockSpec(w.shape, lambda i: (0, 0)))
        in_specs.append(pl.BlockSpec(b.shape, lambda i: (0, 0)))
        args.extend([w, b])

    return pl.pallas_call(
        _make_scale_kernel(num_layers, nsample, tile_p),
        out_shape=jax.ShapeDtypeStruct((cout, p_pad), jnp.float32),
        grid=(n_tiles,),
        in_specs=in_specs,
        out_specs=pl.BlockSpec((cout, tile_p), lambda i: (0, i)),
        compiler_params=pltpu.CompilerParams(
            dimension_semantics=("parallel",),
            vmem_limit_bytes=vmem_limit_bytes),
    )(*args)


# ----------------------------------------------------------------------------
# Plain-JAX glue (FPS, ball query, gather) — mirrors the PyTorch helpers
# ----------------------------------------------------------------------------
def square_distance(src, dst):
    dist = -2.0 * jnp.einsum("bnc,bmc->bnm", src, dst)
    dist = dist + jnp.sum(src ** 2, -1)[:, :, None]
    dist = dist + jnp.sum(dst ** 2, -1)[:, None, :]
    return dist


def index_points(points, idx):
    return jax.vmap(lambda p, i: p[i])(points, idx)


def farthest_point_sample(xyz, npoint, key):
    B, N, _ = xyz.shape
    batch_idx = jnp.arange(B)

    def body(i, state):
        centroids, distance, farthest = state
        centroids = centroids.at[:, i].set(farthest)
        centroid = xyz[batch_idx, farthest][:, None, :]
        dist = jnp.sum((xyz - centroid) ** 2, -1)
        distance = jnp.minimum(distance, dist)
        farthest = jnp.argmax(distance, -1).astype(jnp.int32)
        return centroids, distance, farthest

    centroids0 = jnp.zeros((B, npoint), jnp.int32)
    distance0 = jnp.full((B, N), 1e10, dtype=xyz.dtype)
    farthest0 = jax.random.randint(key, (B,), 0, N, dtype=jnp.int32)
    centroids, _, _ = lax.fori_loop(0, npoint, body,
                                    (centroids0, distance0, farthest0))
    return centroids


def query_ball_point(radius, nsample, xyz, new_xyz):
    B, N, _ = xyz.shape
    S = new_xyz.shape[1]
    sqrdists = square_distance(new_xyz, xyz)
    group_idx = jnp.broadcast_to(jnp.arange(N, dtype=jnp.int32), (B, S, N))
    group_idx = jnp.where(sqrdists > radius ** 2, N, group_idx)
    group_idx = jnp.sort(group_idx, axis=-1)[:, :, :nsample]
    group_first = group_idx[:, :, 0:1]
    group_idx = jnp.where(group_idx == N, group_first, group_idx)
    return group_idx


# ----------------------------------------------------------------------------
# Module
# ----------------------------------------------------------------------------
class PointNetSetAbstractionMsg:
    def __init__(self, npoint, radius_list, nsample_list, in_channel, mlp_list, key):
        self.npoint = npoint
        self.radius_list = list(radius_list)
        self.nsample_list = list(nsample_list)
        self.in_channel = in_channel
        self.cin0 = in_channel + 3
        self.out_channels = [m[-1] for m in mlp_list]
        eps = 1e-5

        # Per-scale folded (conv + eval-mode BN) weights / biases.
        # Weights stored pre-transposed as (Ci, Co) bf16; bias (Co, 1) f32.
        self.scale_w, self.scale_b = [], []
        for mlp in mlp_list:
            last = self.cin0
            ws, bs = [], []
            for out_ch in mlp:
                key, k1, k2 = jax.random.split(key, 3)
                W = jax.random.normal(k1, (out_ch, last), jnp.float32) * 0.1
                bconv = jax.random.normal(k2, (out_ch,), jnp.float32) * 0.01
                gamma = jnp.ones((out_ch,), jnp.float32)
                beta = jnp.zeros((out_ch,), jnp.float32)
                r_mean = jnp.zeros((out_ch,), jnp.float32)
                r_var = jnp.ones((out_ch,), jnp.float32)
                scale = gamma / jnp.sqrt(r_var + eps)
                shift = beta - r_mean * scale
                Wf = W * scale[:, None]                       # (Co, Ci)
                bf = bconv * scale + shift                    # (Co,)
                ws.append(jnp.asarray(Wf.T, jnp.bfloat16))    # (Ci, Co) bf16
                bs.append(bf[:, None].astype(jnp.float32))    # (Co, 1) f32
                last = out_ch
            self.scale_w.append(ws)
            self.scale_b.append(bs)

    def __call__(self, xyz, points, fps_key):
        """
        xyz:    [B, 3, N]  point positions
        points: [B, D, N]  point features
        returns (new_xyz [B,3,S], new_points_concat [B, sum(Cout_i), S])
        """
        xyz_t = jnp.transpose(xyz, (0, 2, 1))                 # [B,N,3] f32
        B, N, _ = xyz_t.shape
        S = self.npoint
        P = B * S

        fps_idx = farthest_point_sample(xyz_t, S, fps_key)    # [B,S]
        new_xyz = index_points(xyz_t, fps_idx)                # [B,S,3]

        # Channel-major flat features (feature channels first, xyz last), cast to
        # bf16 ONCE before any gather (halves all grouped-tensor bytes downstream).
        feats = jnp.concatenate([points, xyz], axis=1)        # [B, Cin0, N]
        feats_flat = feats.transpose(1, 0, 2).reshape(self.cin0, B * N)
        feats_flat = feats_flat.astype(jnp.bfloat16)
        batch_off = (jnp.arange(B, dtype=jnp.int32) * N)[:, None, None]

        new_points_list = []
        for i, radius in enumerate(self.radius_list):
            K = self.nsample_list[i]
            cout = self.out_channels[i]
            tile_p, vmem_limit = _choose_tile_p(P, self.cin0, K, cout)
            p_pad = ((P + tile_p - 1) // tile_p) * tile_p
            n_tiles = p_pad // tile_p

            gidx = query_ball_point(radius, K, xyz_t, new_xyz)            # [B,S,K]
            gidx_flat = (gidx + batch_off).reshape(P, K)                  # global ids
            idx_pad = jnp.pad(gidx_flat, ((0, p_pad - P), (0, 0)))        # pad -> id 0
            idx_arr = idx_pad.reshape(n_tiles, tile_p, K).transpose(0, 2, 1)  # [nt,K,tp]

            # Channel-major gather straight into the kernel layout (bf16).
            grouped = jnp.take(feats_flat, idx_arr, axis=1)   # [Cin0, nt, K, tile_p]

            # Re-center the xyz channels (last 3); fuses into the gather in XLA.
            center = new_xyz.transpose(2, 0, 1).reshape(3, P)             # [3,P] f32
            center = jnp.pad(center, ((0, 0), (0, p_pad - P)))
            center = center.reshape(3, n_tiles, tile_p).astype(jnp.bfloat16)
            center_full = jnp.concatenate(
                [jnp.zeros((self.in_channel, n_tiles, 1, tile_p), jnp.bfloat16),
                 center[:, :, None, :]], axis=0)              # [Cin0, nt, 1, tile_p]
            grouped = grouped - center_full                   # broadcast over K

            x2d = grouped.reshape(self.cin0, n_tiles * K * tile_p)  # contiguous merge

            out = _scale_mlp_max(x2d, self.scale_w[i], self.scale_b[i], cout,
                                 K, tile_p, p_pad, vmem_limit)       # [Cout, p_pad]

            oi = out[:, :P].reshape(cout, B, S).transpose(1, 0, 2)   # [B,Cout,S]
            new_points_list.append(oi)

        new_xyz_out = new_xyz.transpose(0, 2, 1)              # [B,3,S]
        new_points_concat = jnp.concatenate(new_points_list, axis=1)
        return new_xyz_out, new_points_concat


# ----------------------------------------------------------------------------
# Pure-JAX reference (mirrors the PyTorch forward, with matching bf16 casts)
# ----------------------------------------------------------------------------
def _reference_forward(module, xyz, points, fps_key):
    xyz_t = jnp.transpose(xyz, (0, 2, 1))
    pts_t = jnp.transpose(points, (0, 2, 1))
    S = module.npoint
    fps_idx = farthest_point_sample(xyz_t, S, fps_key)
    new_xyz = index_points(xyz_t, fps_idx)
    outs = []
    for i, radius in enumerate(module.radius_list):
        K = module.nsample_list[i]
        gidx = query_ball_point(radius, K, xyz_t, new_xyz)
        g_xyz = index_points(xyz_t, gidx) - new_xyz[:, :, None, :]
        g_pts = index_points(pts_t, gidx)
        g = jnp.concatenate([g_pts, g_xyz], axis=-1)                  # [B,S,K,Cin]
        h = g.astype(jnp.bfloat16).astype(jnp.float32)
        nl = len(module.scale_w[i])
        for j in range(nl):
            W = module.scale_w[i][j].astype(jnp.float32)              # (Ci,Co)
            b = module.scale_b[i][j][:, 0]                            # (Co,)
            z = jnp.maximum(jnp.einsum("bskc,cd->bskd", h, W) + b, 0.0)
            h = z.astype(jnp.bfloat16).astype(jnp.float32) if j + 1 < nl else z
        outs.append(jnp.max(h, axis=2).transpose(0, 2, 1))            # [B,Co,S]
    return new_xyz.transpose(0, 2, 1), jnp.concatenate(outs, axis=1)


# ----------------------------------------------------------------------------
if __name__ == "__main__":
    key = jax.random.PRNGKey(0)
    k_xyz, k_pts, k_params, k_fps = jax.random.split(key, 4)

    B, N, D = 2, 64, 6           # batch, points, feature channels
    npoint = 16
    radius_list = [0.2, 0.4]
    nsample_list = [8, 16]
    mlp_list = [[16, 32], [16, 32]]

    xyz = jax.random.normal(k_xyz, (B, 3, N), jnp.float32)
    points = jax.random.normal(k_pts, (B, D, N), jnp.float32)

    module = PointNetSetAbstractionMsg(npoint, radius_list, nsample_list,
                                       in_channel=D, mlp_list=mlp_list,
                                       key=k_params)

    fwd = jax.jit(module.__call__)   # co-jit glue + per-scale Pallas kernels
    new_xyz, new_points_concat = fwd(xyz, points, k_fps)
    jax.block_until_ready((new_xyz, new_points_concat))

    assert new_xyz.shape == (B, 3, npoint)
    assert new_points_concat.shape == (B, sum(m[-1] for m in mlp_list), npoint)
    assert bool(jnp.all(jnp.isfinite(new_points_concat)))

    ref_xyz, ref_points = _reference_forward(module, xyz, points, k_fps)
    assert bool(jnp.allclose(new_xyz, ref_xyz, atol=1e-5, rtol=1e-5))
    assert bool(jnp.allclose(new_points_concat, ref_points, atol=3e-2, rtol=3e-2))

    print("KERNEL_OK")
</pallas_src>

<mosaic_0001>
module attributes {stable_mosaic.version = 11 : i64} {
  func.func @kernel(%arg0: i32, %arg1: memref<9x1024xbf16, #tpu.memory_space<vmem>>, %arg2: memref<9x16xbf16, #tpu.memory_space<vmem>>, %arg3: memref<16x1xf32, #tpu.memory_space<vmem>>, %arg4: memref<16x32xbf16, #tpu.memory_space<vmem>>, %arg5: memref<32x1xf32, #tpu.memory_space<vmem>>, %arg6: memref<32x128xf32, #tpu.memory_space<vmem>>) attributes {dimension_semantics = [#tpu.dimension_semantics<parallel>], iteration_bounds = array<i64: 1>, scalar_prefetch = 0 : i64, scratch_operands = 0 : i64, tpu.core_type = #tpu.core_type<tc>, window_params = [{transform_indices = @transform_0, window_bounds = array<i64: 9, 1024>}, {pipeline_mode = #tpu.pipeline_mode<synchronous>, transform_indices = @transform_1, window_bounds = array<i64: 9, 16>}, {pipeline_mode = #tpu.pipeline_mode<synchronous>, transform_indices = @transform_2, window_bounds = array<i64: 16, 1>}, {pipeline_mode = #tpu.pipeline_mode<synchronous>, transform_indices = @transform_3, window_bounds = array<i64: 16, 32>}, {pipeline_mode = #tpu.pipeline_mode<synchronous>, transform_indices = @transform_4, window_bounds = array<i64: 32, 1>}, {transform_indices = @transform_5, window_bounds = array<i64: 32, 128>}]} {
    %c0 = arith.constant 0 : index
    %c0_0 = arith.constant 0 : index
    %0 = vector.load %arg1[%c0, %c0_0] : memref<9x1024xbf16, #tpu.memory_space<vmem>>, vector<9x1024xbf16>
    %c0_1 = arith.constant 0 : index
    %c0_2 = arith.constant 0 : index
    %1 = vector.load %arg2[%c0_1, %c0_2] : memref<9x16xbf16, #tpu.memory_space<vmem>>, vector<9x16xbf16>
    %c0_3 = arith.constant 0 : index
    %c0_4 = arith.constant 0 : index
    %2 = vector.load %arg3[%c0_3, %c0_4] : memref<16x1xf32, #tpu.memory_space<vmem>>, vector<16x1xf32>
    %cst = arith.constant dense<0.000000e+00> : vector<16x1024xf32>
    %3 = tpu.matmul %1, %0, %cst {dimension_numbers = #tpu.dot_dimension_numbers<[0], [0], [1], [1], [0, 1, 1, 1], [], []>} : vector<9x16xbf16>, vector<9x1024xbf16>, vector<16x1024xf32> -> vector<16x1024xf32>
    %4 = vector.broadcast %2 : vector<16x1xf32> to vector<16x1024xf32>
    %5 = arith.addf %3, %4 : vector<16x1024xf32>
    %cst_5 = arith.constant 0.000000e+00 : f32
    %6 = vector.broadcast %cst_5 : f32 to vector<16x1024xf32>
    %7 = arith.maximumf %5, %6 : vector<16x1024xf32>
    %8 = arith.truncf %7 : vector<16x1024xf32> to vector<16x1024xbf16>
    %c0_6 = arith.constant 0 : index
    %c0_7 = arith.constant 0 : index
    %9 = vector.load %arg4[%c0_6, %c0_7] : memref<16x32xbf16, #tpu.memory_space<vmem>>, vector<16x32xbf16>
    %c0_8 = arith.constant 0 : index
    %c0_9 = arith.constant 0 : index
    %10 = vector.load %arg5[%c0_8, %c0_9] : memref<32x1xf32, #tpu.memory_space<vmem>>, vector<32x1xf32>
    %cst_10 = arith.constant dense<0.000000e+00> : vector<32x1024xf32>
    %11 = tpu.matmul %9, %8, %cst_10 {dimension_numbers = #tpu.dot_dimension_numbers<[0], [0], [1], [1], [0, 1, 1, 1], [], []>} : vector<16x32xbf16>, vector<16x1024xbf16>, vector<32x1024xf32> -> vector<32x1024xf32>
    %12 = vector.broadcast %10 : vector<32x1xf32> to vector<32x1024xf32>
    %13 = arith.addf %11, %12 : vector<32x1024xf32>
    %cst_11 = arith.constant 0.000000e+00 : f32
    %14 = vector.broadcast %cst_11 : f32 to vector<32x1024xf32>
    %15 = arith.maximumf %13, %14 : vector<32x1024xf32>
    %16 = vector.extract_strided_slice %15 {offsets = [0, 0], sizes = [32, 128], strides = [1, 1]} : vector<32x1024xf32> to vector<32x128xf32>
    %17 = vector.extract_strided_slice %15 {offsets = [0, 128], sizes = [32, 128], strides = [1, 1]} : vector<32x1024xf32> to vector<32x128xf32>
    %18 = arith.maximumf %16, %17 : vector<32x128xf32>
    %19 = vector.extract_strided_slice %15 {offsets = [0, 256], sizes = [32, 128], strides = [1, 1]} : vector<32x1024xf32> to vector<32x128xf32>
    %20 = arith.maximumf %18, %19 : vector<32x128xf32>
    %21 = vector.extract_strided_slice %15 {offsets = [0, 384], sizes = [32, 128], strides = [1, 1]} : vector<32x1024xf32> to vector<32x128xf32>
    %22 = arith.maximumf %20, %21 : vector<32x128xf32>
    %23 = vector.extract_strided_slice %15 {offsets = [0, 512], sizes = [32, 128], strides = [1, 1]} : vector<32x1024xf32> to vector<32x128xf32>
    %24 = arith.maximumf %22, %23 : vector<32x128xf32>
    %25 = vector.extract_strided_slice %15 {offsets = [0, 640], sizes = [32, 128], strides = [1, 1]} : vector<32x1024xf32> to vector<32x128xf32>
    %26 = arith.maximumf %24, %25 : vector<32x128xf32>
    %27 = vector.extract_strided_slice %15 {offsets = [0, 768], sizes = [32, 128], strides = [1, 1]} : vector<32x1024xf32> to vector<32x128xf32>
    %28 = arith.maximumf %26, %27 : vector<32x128xf32>
    %29 = vector.extract_strided_slice %15 {offsets = [0, 896], sizes = [32, 128], strides = [1, 1]} : vector<32x1024xf32> to vector<32x128xf32>
    %30 = arith.maximumf %28, %29 : vector<32x128xf32>
    %c0_12 = arith.constant 0 : index
    %c0_13 = arith.constant 0 : index
    %31 = vector.load %arg6[%c0_12, %c0_13] : memref<32x128xf32, #tpu.memory_space<vmem>>, vector<32x128xf32>
    tpu.vector_store %arg6[%c0_12, %c0_13], %30 {strides = array<i32>} : memref<32x128xf32, #tpu.memory_space<vmem>>, vector<32x128xf32>,
    return
  }
  func.func @transform_0(%arg0: i32) -> (i32, i32) {
    %c0_i32 = arith.constant 0 : i32
    %c0_i32_0 = arith.constant 0 : i32
    return %c0_i32, %arg0 : i32, i32
  }
  func.func @transform_1(%arg0: i32) -> (i32, i32) {
    %c0_i32 = arith.constant 0 : i32
    %c0_i32_0 = arith.constant 0 : i32
    %c0_i32_1 = arith.constant 0 : i32
    return %c0_i32, %c0_i32_0 : i32, i32
  }
  func.func @transform_2(%arg0: i32) -> (i32, i32) {
    %c0_i32 = arith.constant 0 : i32
    %c0_i32_0 = arith.constant 0 : i32
    %c0_i32_1 = arith.constant 0 : i32
    return %c0_i32, %c0_i32_0 : i32, i32
  }
  func.func @transform_3(%arg0: i32) -> (i32, i32) {
    %c0_i32 = arith.constant 0 : i32
    %c0_i32_0 = arith.constant 0 : i32
    %c0_i32_1 = arith.constant 0 : i32
    return %c0_i32, %c0_i32_0 : i32, i32
  }
  func.func @transform_4(%arg0: i32) -> (i32, i32) {
    %c0_i32 = arith.constant 0 : i32
    %c0_i32_0 = arith.constant 0 : i32
    %c0_i32_1 = arith.constant 0 : i32
    return %c0_i32, %c0_i32_0 : i32, i32
  }
  func.func @transform_5(%arg0: i32) -> (i32, i32) {
    %c0_i32 = arith.constant 0 : i32
    %c0_i32_0 = arith.constant 0 : i32
    return %c0_i32, %arg0 : i32, i32
  }
}

module attributes {stable_mosaic.version = 11 : i64} {
  func.func @kernel(%arg0: i32, %arg1: memref<9x2048xbf16, #tpu.memory_space<vmem>>, %arg2: memref<9x16xbf16, #tpu.memory_space<vmem>>, %arg3: memref<16x1xf32, #tpu.memory_space<vmem>>, %arg4: memref<16x32xbf16, #tpu.memory_space<vmem>>, %arg5: memref<32x1xf32, #tpu.memory_space<vmem>>, %arg6: memref<32x128xf32, #tpu.memory_space<vmem>>) attributes {dimension_semantics = [#tpu.dimension_semantics<parallel>], iteration_bounds = array<i64: 1>, scalar_prefetch = 0 : i64, scratch_operands = 0 : i64, tpu.core_type = #tpu.core_type<tc>, window_params = [{transform_indices = @transform_0, window_bounds = array<i64: 9, 2048>}, {pipeline_mode = #tpu.pipeline_mode<synchronous>, transform_indices = @transform_1, window_bounds = array<i64: 9, 16>}, {pipeline_mode = #tpu.pipeline_mode<synchronous>, transform_indices = @transform_2, window_bounds = array<i64: 16, 1>}, {pipeline_mode = #tpu.pipeline_mode<synchronous>, transform_indices = @transform_3, window_bounds = array<i64: 16, 32>}, {pipeline_mode = #tpu.pipeline_mode<synchronous>, transform_indices = @transform_4, window_bounds = array<i64: 32, 1>}, {transform_indices = @transform_5, window_bounds = array<i64: 32, 128>}]} {
    %c0 = arith.constant 0 : index
    %c0_0 = arith.constant 0 : index
    %0 = vector.load %arg1[%c0, %c0_0] : memref<9x2048xbf16, #tpu.memory_space<vmem>>, vector<9x2048xbf16>
    %c0_1 = arith.constant 0 : index
    %c0_2 = arith.constant 0 : index
    %1 = vector.load %arg2[%c0_1, %c0_2] : memref<9x16xbf16, #tpu.memory_space<vmem>>, vector<9x16xbf16>
    %c0_3 = arith.constant 0 : index
    %c0_4 = arith.constant 0 : index
    %2 = vector.load %arg3[%c0_3, %c0_4] : memref<16x1xf32, #tpu.memory_space<vmem>>, vector<16x1xf32>
    %cst = arith.constant dense<0.000000e+00> : vector<16x2048xf32>
    %3 = tpu.matmul %1, %0, %cst {dimension_numbers = #tpu.dot_dimension_numbers<[0], [0], [1], [1], [0, 1, 1, 1], [], []>} : vector<9x16xbf16>, vector<9x2048xbf16>, vector<16x2048xf32> -> vector<16x2048xf32>
    %4 = vector.broadcast %2 : vector<16x1xf32> to vector<16x2048xf32>
    %5 = arith.addf %3, %4 : vector<16x2048xf32>
    %cst_5 = arith.constant 0.000000e+00 : f32
    %6 = vector.broadcast %cst_5 : f32 to vector<16x2048xf32>
    %7 = arith.maximumf %5, %6 : vector<16x2048xf32>
    %8 = arith.truncf %7 : vector<16x2048xf32> to vector<16x2048xbf16>
    %c0_6 = arith.constant 0 : index
    %c0_7 = arith.constant 0 : index
    %9 = vector.load %arg4[%c0_6, %c0_7] : memref<16x32xbf16, #tpu.memory_space<vmem>>, vector<16x32xbf16>
    %c0_8 = arith.constant 0 : index
    %c0_9 = arith.constant 0 : index
    %10 = vector.load %arg5[%c0_8, %c0_9] : memref<32x1xf32, #tpu.memory_space<vmem>>, vector<32x1xf32>
    %cst_10 = arith.constant dense<0.000000e+00> : vector<32x2048xf32>
    %11 = tpu.matmul %9, %8, %cst_10 {dimension_numbers = #tpu.dot_dimension_numbers<[0], [0], [1], [1], [0, 1, 1, 1], [], []>} : vector<16x32xbf16>, vector<16x2048xbf16>, vector<32x2048xf32> -> vector<32x2048xf32>
    %12 = vector.broadcast %10 : vector<32x1xf32> to vector<32x2048xf32>
    %13 = arith.addf %11, %12 : vector<32x2048xf32>
    %cst_11 = arith.constant 0.000000e+00 : f32
    %14 = vector.broadcast %cst_11 : f32 to vector<32x2048xf32>
    %15 = arith.maximumf %13, %14 : vector<32x2048xf32>
    %16 = vector.extract_strided_slice %15 {offsets = [0, 0], sizes = [32, 128], strides = [1, 1]} : vector<32x2048xf32> to vector<32x128xf32>
    %17 = vector.extract_strided_slice %15 {offsets = [0, 128], sizes = [32, 128], strides = [1, 1]} : vector<32x2048xf32> to vector<32x128xf32>
    %18 = arith.maximumf %16, %17 : vector<32x128xf32>
    %19 = vector.extract_strided_slice %15 {offsets = [0, 256], sizes = [32, 128], strides = [1, 1]} : vector<32x2048xf32> to vector<32x128xf32>
    %20 = arith.maximumf %18, %19 : vector<32x128xf32>
    %21 = vector.extract_strided_slice %15 {offsets = [0, 384], sizes = [32, 128], strides = [1, 1]} : vector<32x2048xf32> to vector<32x128xf32>
    %22 = arith.maximumf %20, %21 : vector<32x128xf32>
    %23 = vector.extract_strided_slice %15 {offsets = [0, 512], sizes = [32, 128], strides = [1, 1]} : vector<32x2048xf32> to vector<32x128xf32>
    %24 = arith.maximumf %22, %23 : vector<32x128xf32>
    %25 = vector.extract_strided_slice %15 {offsets = [0, 640], sizes = [32, 128], strides = [1, 1]} : vector<32x2048xf32> to vector<32x128xf32>
    %26 = arith.maximumf %24, %25 : vector<32x128xf32>
    %27 = vector.extract_strided_slice %15 {offsets = [0, 768], sizes = [32, 128], strides = [1, 1]} : vector<32x2048xf32> to vector<32x128xf32>
    %28 = arith.maximumf %26, %27 : vector<32x128xf32>
    %29 = vector.extract_strided_slice %15 {offsets = [0, 896], sizes = [32, 128], strides = [1, 1]} : vector<32x2048xf32> to vector<32x128xf32>
    %30 = arith.maximumf %28, %29 : vector<32x128xf32>
    %31 = vector.extract_strided_slice %15 {offsets = [0, 1024], sizes = [32, 128], strides = [1, 1]} : vector<32x2048xf32> to vector<32x128xf32>
    %32 = arith.maximumf %30, %31 : vector<32x128xf32>
    %33 = vector.extract_strided_slice %15 {offsets = [0, 1152], sizes = [32, 128], strides = [1, 1]} : vector<32x2048xf32> to vector<32x128xf32>
    %34 = arith.maximumf %32, %33 : vector<32x128xf32>
    %35 = vector.extract_strided_slice %15 {offsets = [0, 1280], sizes = [32, 128], strides = [1, 1]} : vector<32x2048xf32> to vector<32x128xf32>
    %36 = arith.maximumf %34, %35 : vector<32x128xf32>
    %37 = vector.extract_strided_slice %15 {offsets = [0, 1408], sizes = [32, 128], strides = [1, 1]} : vector<32x2048xf32> to vector<32x128xf32>
    %38 = arith.maximumf %36, %37 : vector<32x128xf32>
    %39 = vector.extract_strided_slice %15 {offsets = [0, 1536], sizes = [32, 128], strides = [1, 1]} : vector<32x2048xf32> to vector<32x128xf32>
    %40 = arith.maximumf %38, %39 : vector<32x128xf32>
    %41 = vector.extract_strided_slice %15 {offsets = [0, 1664], sizes = [32, 128], strides = [1, 1]} : vector<32x2048xf32> to vector<32x128xf32>
    %42 = arith.maximumf %40, %41 : vector<32x128xf32>
    %43 = vector.extract_strided_slice %15 {offsets = [0, 1792], sizes = [32, 128], strides = [1, 1]} : vector<32x2048xf32> to vector<32x128xf32>
    %44 = arith.maximumf %42, %43 : vector<32x128xf32>
    %45 = vector.extract_strided_slice %15 {offsets = [0, 1920], sizes = [32, 128], strides = [1, 1]} : vector<32x2048xf32> to vector<32x128xf32>
    %46 = arith.maximumf %44, %45 : vector<32x128xf32>
    %c0_12 = arith.constant 0 : index
    %c0_13 = arith.constant 0 : index
    %47 = vector.load %arg6[%c0_12, %c0_13] : memref<32x128xf32, #tpu.memory_space<vmem>>, vector<32x128xf32>
    tpu.vector_store %arg6[%c0_12, %c0_13], %46 {strides = array<i32>} : memref<32x128xf32, #tpu.memory_space<vmem>>, vector<32x128xf32>,
    return
  }
  func.func @transform_0(%arg0: i32) -> (i32, i32) {
    %c0_i32 = arith.constant 0 : i32
    %c0_i32_0 = arith.constant 0 : i32
    return %c0_i32, %arg0 : i32, i32
  }
  func.func @transform_1(%arg0: i32) -> (i32, i32) {
    %c0_i32 = arith.constant 0 : i32
    %c0_i32_0 = arith.constant 0 : i32
    %c0_i32_1 = arith.constant 0 : i32
    return %c0_i32, %c0_i32_0 : i32, i32
  }
  func.func @transform_2(%arg0: i32) -> (i32, i32) {
    %c0_i32 = arith.constant 0 : i32
    %c0_i32_0 = arith.constant 0 : i32
    %c0_i32_1 = arith.constant 0 : i32
    return %c0_i32, %c0_i32_0 : i32, i32
  }
  func.func @transform_3(%arg0: i32) -> (i32, i32) {
    %c0_i32 = arith.constant 0 : i32
    %c0_i32_0 = arith.constant 0 : i32
    %c0_i32_1 = arith.constant 0 : i32
    return %c0_i32, %c0_i32_0 : i32, i32
  }
  func.func @transform_4(%arg0: i32) -> (i32, i32) {
    %c0_i32 = arith.constant 0 : i32
    %c0_i32_0 = arith.constant 0 : i32
    %c0_i32_1 = arith.constant 0 : i32
    return %c0_i32, %c0_i32_0 : i32, i32
  }
  func.func @transform_5(%arg0: i32) -> (i32, i32) {
    %c0_i32 = arith.constant 0 : i32
    %c0_i32_0 = arith.constant 0 : i32
    return %c0_i32, %arg0 : i32, i32
  }
}

</mosaic_0001>

<llo_original>
// kernel: custom-call.4
$region0: #{custom-call.4}
  %s0 = inlined_call_operand.vmem [shape: f32[2,64], index: 0, kind: output, shape index: {}]

// kernel: a_call__.2
$region0: #{a_call__.2}
  #allocation0 [shape = 'u32[]', space=smem, size = 0x4, offset = 0x4, fixed_abs, tag = 'smem constant byte address 0x4 - core index']
  #allocation1 [shape = 'u32[144,128]{1,0:T(1,128)}', space=vmem, size = 0x12000, scoped, tag = 'internal scratch']
  %s0 = inlined_call_operand.vmem [shape: bf16[9,1024], index: 0, kind: input, shape index: {}]
  %s1 = inlined_call_operand.vmem [shape: bf16[9,16], index: 1, kind: input, shape index: {}]
  %s2 = inlined_call_operand.vmem [shape: f32[16,1], index: 2, kind: input, shape index: {}]
  %s3 = inlined_call_operand.vmem [shape: bf16[16,32], index: 3, kind: input, shape index: {}]
  %s4 = inlined_call_operand.vmem [shape: f32[32,1], index: 4, kind: input, shape index: {}]
  %s5 = inlined_call_operand.vmem [shape: f32[32,128], index: 5, kind: output, shape index: {}]
  %s6 = sld [smem:[#allocation0]]
  $region30: #{a_call__.2} parent=0
    _
  %s8 = ssub.s32 1, %s6
  %s9 = scalar_select 0, %s8, %s6
  // Predicated region
  $region2: #{a_call__.2} parent=0 // pred_check
    _
  $region3: #{a_call__.2} parent=0 // pred_check_branch
    %11 = sbr.rel (0) target = $region5
  $region4: #{a_call__.2} parent=0 // pred_region
    _
  $region5: #{a_call__.2} parent=0 // pred_fallthru
    _
  // Predicated region
  $region6: #{a_call__.2} parent=0 // pred_check
    _
  $region7: #{a_call__.2} parent=0 // pred_check_branch
    %13 = sbr.rel (0) target = $region9
  $region8: #{a_call__.2} parent=0 // pred_region
    _
  $region9: #{a_call__.2} parent=0 // pred_fallthru
    _
  // Predicated region
  $region10: #{a_call__.2} parent=0 // pred_check
    _
  $region11: #{a_call__.2} parent=0 // pred_check_branch
    %15 = sbr.rel (0) target = $region13
  $region12: #{a_call__.2} parent=0 // pred_region
    _
  $region13: #{a_call__.2} parent=0 // pred_fallthru
    _
  // Predicated region
  $region14: #{a_call__.2} parent=0 // pred_check
    _
  $region15: #{a_call__.2} parent=0 // pred_check_branch
    %17 = sbr.rel (0) target = $region17
  $region16: #{a_call__.2} parent=0 // pred_region
    _
  $region17: #{a_call__.2} parent=0 // pred_fallthru
    _
  // Predicated region
  $region18: #{a_call__.2} parent=0 // pred_check
    _
  $region19: #{a_call__.2} parent=0 // pred_check_branch
    %19 = sbr.rel (0) target = $region21
  $region20: #{a_call__.2} parent=0 // pred_region
    _
  $region21: #{a_call__.2} parent=0 // pred_fallthru
    _
  %v21 = vld [vmem:[%s0] sm:$0xff]
  %v22 = vld [vmem:[%s0 + $0x8] sm:$0xff]
  %v23 = vld [vmem:[%s0 + $0x10] sm:$0xff]
  %v24 = vld [vmem:[%s0 + $0x18] sm:$0xff]
  %v25 = vld [vmem:[%s0 + $0x20] sm:$0x11]
  %v26 = vld [vmem:[%s0 + $0x28] sm:$0x11]
  %v27 = vld [vmem:[%s0 + $0x30] sm:$0x11]
  %v28 = vld [vmem:[%s0 + $0x38] sm:$0x11]
  %v29 = vld [vmem:[%s1] sm:$0xf]
  %v30 = vld [vmem:[%s1 + $0x4] sm:$0x1]
  %v31 = vld [vmem:[%s2] sm:$0xff]
  %v32 = vld [vmem:[%s2 + $0x8] sm:$0xff]
  %34 = vset.pattern.permute.xlu0 0
  %35 = vperm.xlu0 %34, %v31
  %v36 = vpop.permute.xlu0 %35
  %39 = vset.pattern.permute.xlu0 0
  %40 = vperm.xlu0 %39, %v32
  %v41 = vpop.permute.xlu0 %40
  %v45 = vunpack.c.l.b16 %v29
  %v46 = vunpack.c.l.b16 %v30
  %v47 = vpack.c.b16 %v46, %v45
  %49 = vxpose.xlu0.c.b16.start [1/8] %v47, 128
  %50 = vxpose.xlu0.c.b16.cont [2/8] 0, 128
  %51 = vxpose.xlu0.c.b16.cont [3/8] 0, 128
  %52 = vxpose.xlu0.c.b16.cont [4/8] 0, 128
  %53 = vxpose.xlu0.c.b16.cont [5/8] 0, 128
  %54 = vxpose.xlu0.c.b16.cont [6/8] 0, 128
  %55 = vxpose.xlu0.c.b16.cont [7/8] 0, 128
  %56 = vxpose.xlu0.c.b16.end [8/8] 0, 128
  %v57 = vpop.trf.xlu0
  %v58 = vpop.trf.xlu0
  %v59 = vpop.trf.xlu0
  %v60 = vpop.trf.xlu0
  %v61 = vpop.trf.xlu0
  %v62 = vpop.trf.xlu0
  %v63 = vpop.trf.xlu0
  %v64 = vpop.trf.xlu0
  %v73 = vunpack.c.l.b16 %v21
  %v74 = vunpack.c.h.b16 %v21
  %v75 = vunpack.c.l.b16 %v22
  %v76 = vunpack.c.h.b16 %v22
  %v77 = vunpack.c.l.b16 %v23
  %v78 = vunpack.c.h.b16 %v23
  %v79 = vunpack.c.l.b16 %v24
  %v80 = vunpack.c.h.b16 %v24
  %v81 = vunpack.c.l.b16 %v25
  %v82 = vunpack.c.h.b16 %v25
  %v83 = vunpack.c.l.b16 %v26
  %v84 = vunpack.c.h.b16 %v26
  %v85 = vunpack.c.l.b16 %v27
  %v86 = vunpack.c.h.b16 %v27
  %v87 = vunpack.c.l.b16 %v28
  %v88 = vunpack.c.h.b16 %v28
  %v89 = vpack.c.b16 %v81, %v73
  %v90 = vpack.c.b16 %v82, %v74
  %v91 = vpack.c.b16 %v83, %v75
  %v92 = vpack.c.b16 %v84, %v76
  %v93 = vpack.c.b16 %v85, %v77
  %v94 = vpack.c.b16 %v86, %v78
  %v95 = vpack.c.b16 %v87, %v79
  %v96 = vpack.c.b16 %v88, %v80
  %vm97 = vcmask 72704
  %v99 = vsel %vm97, %v57, 0
  %vm101 = vcmask 1043456
  %vm102 = vcmask 1044480
  %v103 = vsel %vm101, 4294967295, 65535
  %v104 = vsel %vm102, %v103, 0
  %v106 = vand.u32 %v89, %v104
  %v109 = vand.u32 %v90, %v104
  %v112 = vand.u32 %v91, %v104
  %v115 = vand.u32 %v92, %v104
  %v118 = vand.u32 %v93, %v104
  %v121 = vand.u32 %v94, %v104
  %v124 = vand.u32 %v95, %v104
  %v127 = vand.u32 %v96, %v104
  %129 = vmatprep.subr.bf16.mxu0 %v109
  %130 = vmatpush1.bf16.msra.mxu0 %v106
  %131 = vmatprep.subr.bf16.mxu0 0
  %132 = vmatpush1.bf16.msra.mxu0 0
  %133 = vmatprep.subr.bf16.mxu0 0
  %134 = vmatpush1.bf16.msra.mxu0 0
  %135 = vmatprep.subr.bf16.mxu0 0
  %136 = vmatpush1.bf16.msra.mxu0 0
  %137 = vmatprep.subr.bf16.mxu0 0
  %138 = vmatpush1.bf16.msra.mxu0 0
  %139 = vmatprep.subr.bf16.mxu0 0
  %140 = vmatpush1.bf16.msra.mxu0 0
  %141 = vmatprep.subr.bf16.mxu0 0
  %142 = vmatpush1.bf16.msra.mxu0 0
  %143 = vmatprep.subr.bf16.mxu0 0
  %144 = vmatpush1.bf16.msra.mxu0 0
  %145 = vmatprep.subr.bf16.mxu0 0
  %146 = vmatpush1.bf16.msra.mxu0 0
  %147 = vmatprep.subr.bf16.mxu0 0
  %148 = vmatpush1.bf16.msra.mxu0 0
  %149 = vmatprep.subr.bf16.mxu0 0
  %150 = vmatpush1.bf16.msra.mxu0 0
  %151 = vmatprep.subr.bf16.mxu0 0
  %152 = vmatpush1.bf16.msra.mxu0 0
  %153 = vmatprep.subr.bf16.mxu0 0
  %154 = vmatpush1.bf16.msra.mxu0 0
  %155 = vmatprep.subr.bf16.mxu0 0
  %156 = vmatpush1.bf16.msra.mxu0 0
  %157 = vmatprep.subr.bf16.mxu0 0
  %158 = vmatpush1.bf16.msra.mxu0 0
  %159 = vmatprep.subr.bf16.mxu0 0
  %160 = vmatpush1.bf16.msra.mxu0 0
  %161 = vmatprep.mubr.bf16.mxu0 0
  %162 = vmatmul.mubr.bf16.gmra.mrb[0].mxu0 %v99
  %v163 = vpop.f32.mrb[0].mxu0
  %v164 = vadd.f32 %v36, %v163
  %v165 = vpop.f32.mrb[0].mxu0
  %v166 = vadd.f32 %v36, %v165
  %v167 = vpop.f32.mrb[0].mxu0
  %v168 = vadd.f32 %v41, %v167
  %v169 = vpop.f32.mrb[0].mxu0
  %v170 = vadd.f32 %v41, %v169
  %171 = vdwg.mxu0
  %172 = vmatprep.subr.bf16.mxu0 %v115
  %173 = vmatpush1.bf16.msra.mxu0 %v112
  %174 = vmatprep.subr.bf16.mxu0 0
  %175 = vmatpush1.bf16.msra.mxu0 0
  %176 = vmatprep.subr.bf16.mxu0 0
  %177 = vmatpush1.bf16.msra.mxu0 0
  %178 = vmatprep.subr.bf16.mxu0 0
  %179 = vmatpush1.bf16.msra.mxu0 0
  %180 = vmatprep.subr.bf16.mxu0 0
  %181 = vmatpush1.bf16.msra.mxu0 0
  %182 = vmatprep.subr.bf16.mxu0 0
  %183 = vmatpush1.bf16.msra.mxu0 0
  %184 = vmatprep.subr.bf16.mxu0 0
  %185 = vmatpush1.bf16.msra.mxu0 0
  %186 = vmatprep.subr.bf16.mxu0 0
  %187 = vmatpush1.bf16.msra.mxu0 0
  %188 = vmatprep.subr.bf16.mxu0 0
  %189 = vmatpush1.bf16.msra.mxu0 0
  %190 = vmatprep.subr.bf16.mxu0 0
  %191 = vmatpush1.bf16.msra.mxu0 0
  %192 = vmatprep.subr.bf16.mxu0 0
  %193 = vmatpush1.bf16.msra.mxu0 0
  %194 = vmatprep.subr.bf16.mxu0 0
  %195 = vmatpush1.bf16.msra.mxu0 0
  %196 = vmatprep.subr.bf16.mxu0 0
  %197 = vmatpush1.bf16.msra.mxu0 0
  %198 = vmatprep.subr.bf16.mxu0 0
  %199 = vmatpush1.bf16.msra.mxu0 0
  %200 = vmatprep.subr.bf16.mxu0 0
  %201 = vmatpush1.bf16.msra.mxu0 0
  %202 = vmatprep.subr.bf16.mxu0 0
  %203 = vmatpush1.bf16.msra.mxu0 0
  %204 = vmatprep.mubr.bf16.mxu0 0
  %205 = vmatmul.mubr.bf16.gmra.mrb[0].mxu0 %v99
  %v206 = vpop.f32.mrb[0].mxu0
  %v207 = vadd.f32 %v36, %v206
  %v208 = vpop.f32.mrb[0].mxu0
  %v209 = vadd.f32 %v36, %v208
  %v210 = vpop.f32.mrb[0].mxu0
  %v211 = vadd.f32 %v41, %v210
  %v212 = vpop.f32.mrb[0].mxu0
  %v213 = vadd.f32 %v41, %v212
  %214 = vdwg.mxu0
  %215 = vmatprep.subr.bf16.mxu0 %v121
  %216 = vmatpush1.bf16.msra.mxu0 %v118
  %217 = vmatprep.subr.bf16.mxu0 0
  %218 = vmatpush1.bf16.msra.mxu0 0
  %219 = vmatprep.subr.bf16.mxu0 0
  %220 = vmatpush1.bf16.msra.mxu0 0
  %221 = vmatprep.subr.bf16.mxu0 0
  %222 = vmatpush1.bf16.msra.mxu0 0
  %223 = vmatprep.subr.bf16.mxu0 0
  %224 = vmatpush1.bf16.msra.mxu0 0
  %225 = vmatprep.subr.bf16.mxu0 0
  %226 = vmatpush1.bf16.msra.mxu0 0
  %227 = vmatprep.subr.bf16.mxu0 0
  %228 = vmatpush1.bf16.msra.mxu0 0
  %229 = vmatprep.subr.bf16.mxu0 0
  %230 = vmatpush1.bf16.msra.mxu0 0
  %231 = vmatprep.subr.bf16.mxu0 0
  %232 = vmatpush1.bf16.msra.mxu0 0
  %233 = vmatprep.subr.bf16.mxu0 0
  %234 = vmatpush1.bf16.msra.mxu0 0
  %235 = vmatprep.subr.bf16.mxu0 0
  %236 = vmatpush1.bf16.msra.mxu0 0
  %237 = vmatprep.subr.bf16.mxu0 0
  %238 = vmatpush1.bf16.msra.mxu0 0
  %239 = vmatprep.subr.bf16.mxu0 0
  %240 = vmatpush1.bf16.msra.mxu0 0
  %241 = vmatprep.subr.bf16.mxu0 0
  %242 = vmatpush1.bf16.msra.mxu0 0
  %243 = vmatprep.subr.bf16.mxu0 0
  %244 = vmatpush1.bf16.msra.mxu0 0
  %245 = vmatprep.subr.bf16.mxu0 0
  %246 = vmatpush1.bf16.msra.mxu0 0
  %247 = vmatprep.mubr.bf16.mxu0 0
  %248 = vmatmul.mubr.bf16.gmra.mrb[0].mxu0 %v99
  %v249 = vpop.f32.mrb[0].mxu0
  %v250 = vadd.f32 %v36, %v249
  %v251 = vpop.f32.mrb[0].mxu0
  %v252 = vadd.f32 %v36, %v251
  %v253 = vpop.f32.mrb[0].mxu0
  %v254 = vadd.f32 %v41, %v253
  %v255 = vpop.f32.mrb[0].mxu0
  %v256 = vadd.f32 %v41, %v255
  %257 = vdwg.mxu0
  %258 = vmatprep.subr.bf16.mxu0 %v127
  %259 = vmatpush1.bf16.msra.mxu0 %v124
  %260 = vmatprep.subr.bf16.mxu0 0
  %261 = vmatpush1.bf16.msra.mxu0 0
  %262 = vmatprep.subr.bf16.mxu0 0
  %263 = vmatpush1.bf16.msra.mxu0 0
  %264 = vmatprep.subr.bf16.mxu0 0
  %265 = vmatpush1.bf16.msra.mxu0 0
  %266 = vmatprep.subr.bf16.mxu0 0
  %267 = vmatpush1.bf16.msra.mxu0 0
  %268 = vmatprep.subr.bf16.mxu0 0
  %269 = vmatpush1.bf16.msra.mxu0 0
  %270 = vmatprep.subr.bf16.mxu0 0
  %271 = vmatpush1.bf16.msra.mxu0 0
  %272 = vmatprep.subr.bf16.mxu0 0
  %273 = vmatpush1.bf16.msra.mxu0 0
  %274 = vmatprep.subr.bf16.mxu0 0
  %275 = vmatpush1.bf16.msra.mxu0 0
  %276 = vmatprep.subr.bf16.mxu0 0
  %277 = vmatpush1.bf16.msra.mxu0 0
  %278 = vmatprep.subr.bf16.mxu0 0
  %279 = vmatpush1.bf16.msra.mxu0 0
  %280 = vmatprep.subr.bf16.mxu0 0
  %281 = vmatpush1.bf16.msra.mxu0 0
  %282 = vmatprep.subr.bf16.mxu0 0
  %283 = vmatpush1.bf16.msra.mxu0 0
  %284 = vmatprep.subr.bf16.mxu0 0
  %285 = vmatpush1.bf16.msra.mxu0 0
  %286 = vmatprep.subr.bf16.mxu0 0
  %287 = vmatpush1.bf16.msra.mxu0 0
  %288 = vmatprep.subr.bf16.mxu0 0
  %289 = vmatpush1.bf16.msra.mxu0 0
  %290 = vmatprep.mubr.bf16.mxu0 0
  %291 = vmatmul.mubr.bf16.gmra.mrb[0].mxu0 %v99
  %v292 = vpop.f32.mrb[0].mxu0
  %v293 = vadd.f32 %v36, %v292
  %v294 = vpop.f32.mrb[0].mxu0
  %v295 = vadd.f32 %v36, %v294
  %v296 = vpop.f32.mrb[0].mxu0
  %v297 = vadd.f32 %v41, %v296
  %v298 = vpop.f32.mrb[0].mxu0
  %v299 = vadd.f32 %v41, %v298
  %300 = vdwg.mxu0
  %v301 = vmax.f32 %v164, 0.0
  %v302 = vmax.f32 %v166, 0.0
  %v303 = vmax.f32 %v207, 0.0
  %v304 = vmax.f32 %v209, 0.0
  %v305 = vmax.f32 %v250, 0.0
  %v306 = vmax.f32 %v252, 0.0
  %v307 = vmax.f32 %v293, 0.0
  %v308 = vmax.f32 %v295, 0.0
  %v309 = vmax.f32 %v168, 0.0
  %v310 = vmax.f32 %v170, 0.0
  %v311 = vmax.f32 %v211, 0.0
  %v312 = vmax.f32 %v213, 0.0
  %v313 = vmax.f32 %v254, 0.0
  %v314 = vmax.f32 %v256, 0.0
  %v315 = vmax.f32 %v297, 0.0
  %v316 = vmax.f32 %v299, 0.0
  %v317 = vpack.c.bf16 %v309, %v301
  %v318 = vpack.c.bf16 %v310, %v302
  %v319 = vpack.c.bf16 %v311, %v303
  %v320 = vpack.c.bf16 %v312, %v304
  %v321 = vpack.c.bf16 %v313, %v305
  %v322 = vpack.c.bf16 %v314, %v306
  %v323 = vpack.c.bf16 %v315, %v307
  %v324 = vpack.c.bf16 %v316, %v308
  %v325 = vld [vmem:[%s3] sm:$0xf]
  %v326 = vld [vmem:[%s3 + $0x4] sm:$0xf]
  %v327 = vld [vmem:[%s4] sm:$0xff]
  %v328 = vld [vmem:[%s4 + $0x8] sm:$0xff]
  %v329 = vld [vmem:[%s4 + $0x10] sm:$0xff]
  %v330 = vld [vmem:[%s4 + $0x18] sm:$0xff]
  %332 = vset.pattern.permute.xlu0 0
  %333 = vperm.xlu0 %332, %v327
  %v334 = vpop.permute.xlu0 %333
  %337 = vset.pattern.permute.xlu0 0
  %338 = vperm.xlu0 %337, %v328
  %v339 = vpop.permute.xlu0 %338
  %342 = vset.pattern.permute.xlu0 0
  %343 = vperm.xlu0 %342, %v329
  %v344 = vpop.permute.xlu0 %343
  %347 = vset.pattern.permute.xlu0 0
  %348 = vperm.xlu0 %347, %v330
  %v349 = vpop.permute.xlu0 %348
  %v353 = vunpack.c.l.b16 %v325
  %v354 = vunpack.c.l.b16 %v326
  %v355 = vpack.c.b16 %v354, %v353
  %357 = vxpose.xlu0.c.b16.start [1/8] %v355, 128
  %358 = vxpose.xlu0.c.b16.cont [2/8] 0, 128
  %359 = vxpose.xlu0.c.b16.cont [3/8] 0, 128
  %360 = vxpose.xlu0.c.b16.cont [4/8] 0, 128
  %361 = vxpose.xlu0.c.b16.cont [5/8] 0, 128
  %362 = vxpose.xlu0.c.b16.cont [6/8] 0, 128
  %363 = vxpose.xlu0.c.b16.cont [7/8] 0, 128
  %364 = vxpose.xlu0.c.b16.end [8/8] 0, 128
  %v365 = vpop.trf.xlu0
  %v366 = vpop.trf.xlu0
  %v367 = vpop.trf.xlu0
  %v368 = vpop.trf.xlu0
  %v369 = vpop.trf.xlu0
  %v370 = vpop.trf.xlu0
  %v371 = vpop.trf.xlu0
  %v372 = vpop.trf.xlu0
  %vm373 = vcmask 130048
  %v375 = vsel %vm373, %v365, 0
  %v378 = vsel %vm373, %v366, 0
  %380 = vmatprep.subr.bf16.mxu0 %v318
  %381 = vmatpush1.bf16.msra.mxu0 %v317
  %382 = vmatprep.subr.bf16.mxu0 0
  %383 = vmatpush1.bf16.msra.mxu0 0
  %384 = vmatprep.subr.bf16.mxu0 0
  %385 = vmatpush1.bf16.msra.mxu0 0
  %386 = vmatprep.subr.bf16.mxu0 0
  %387 = vmatpush1.bf16.msra.mxu0 0
  %388 = vmatprep.subr.bf16.mxu0 0
  %389 = vmatpush1.bf16.msra.mxu0 0
  %390 = vmatprep.subr.bf16.mxu0 0
  %391 = vmatpush1.bf16.msra.mxu0 0
  %392 = vmatprep.subr.bf16.mxu0 0
  %393 = vmatpush1.bf16.msra.mxu0 0
  %394 = vmatprep.subr.bf16.mxu0 0
  %395 = vmatpush1.bf16.msra.mxu0 0
  %396 = vmatprep.subr.bf16.mxu0 0
  %397 = vmatpush1.bf16.msra.mxu0 0
  %398 = vmatprep.subr.bf16.mxu0 0
  %399 = vmatpush1.bf16.msra.mxu0 0
  %400 = vmatprep.subr.bf16.mxu0 0
  %401 = vmatpush1.bf16.msra.mxu0 0
  %402 = vmatprep.subr.bf16.mxu0 0
  %403 = vmatpush1.bf16.msra.mxu0 0
  %404 = vmatprep.subr.bf16.mxu0 0
  %405 = vmatpush1.bf16.msra.mxu0 0
  %406 = vmatprep.subr.bf16.mxu0 0
  %407 = vmatpush1.bf16.msra.mxu0 0
  %408 = vmatprep.subr.bf16.mxu0 0
  %409 = vmatpush1.bf16.msra.mxu0 0
  %410 = vmatprep.subr.bf16.mxu0 0
  %411 = vmatpush1.bf16.msra.mxu0 0
  %412 = vmatprep.mubr.bf16.mxu0 0
  %413 = vmatmul.mubr.bf16.gmra.mrb[0].mxu0 %v375
  %v414 = vpop.f32.mrb[0].mxu0
  %v415 = vadd.f32 %v334, %v414
  %v416 = vpop.f32.mrb[0].mxu0
  %v417 = vadd.f32 %v334, %v416
  %v418 = vpop.f32.mrb[0].mxu0
  %v419 = vadd.f32 %v339, %v418
  %v420 = vpop.f32.mrb[0].mxu0
  %v421 = vadd.f32 %v339, %v420
  %422 = vmatprep.mubr.bf16.mxu0 0
  %423 = vmatmul.mubr.bf16.gmra.mrb[0].mxu0 %v378
  %v424 = vpop.f32.mrb[0].mxu0
  %v425 = vadd.f32 %v344, %v424
  %v426 = vpop.f32.mrb[0].mxu0
  %v427 = vadd.f32 %v344, %v426
  %v428 = vpop.f32.mrb[0].mxu0
  %v429 = vadd.f32 %v349, %v428
  %v430 = vpop.f32.mrb[0].mxu0
  %v431 = vadd.f32 %v349, %v430
  %432 = vdwg.mxu0
  %433 = vmatprep.subr.bf16.mxu0 %v320
  %434 = vmatpush1.bf16.msra.mxu0 %v319
  %435 = vmatprep.subr.bf16.mxu0 0
  %436 = vmatpush1.bf16.msra.mxu0 0
  %437 = vmatprep.subr.bf16.mxu0 0
  %438 = vmatpush1.bf16.msra.mxu0 0
  %439 = vmatprep.subr.bf16.mxu0 0
  %440 = vmatpush1.bf16.msra.mxu0 0
  %441 = vmatprep.subr.bf16.mxu0 0
  %442 = vmatpush1.bf16.msra.mxu0 0
  %443 = vmatprep.subr.bf16.mxu0 0
  %444 = vmatpush1.bf16.msra.mxu0 0
  %445 = vmatprep.subr.bf16.mxu0 0
  %446 = vmatpush1.bf16.msra.mxu0 0
  %447 = vmatprep.subr.bf16.mxu0 0
  %448 = vmatpush1.bf16.msra.mxu0 0
  %449 = vmatprep.subr.bf16.mxu0 0
  %450 = vmatpush1.bf16.msra.mxu0 0
  %451 = vmatprep.subr.bf16.mxu0 0
  %452 = vmatpush1.bf16.msra.mxu0 0
  %453 = vmatprep.subr.bf16.mxu0 0
  %454 = vmatpush1.bf16.msra.mxu0 0
  %455 = vmatprep.subr.bf16.mxu0 0
  %456 = vmatpush1.bf16.msra.mxu0 0
  %457 = vmatprep.subr.bf16.mxu0 0
  %458 = vmatpush1.bf16.msra.mxu0 0
  %459 = vmatprep.subr.bf16.mxu0 0
  %460 = vmatpush1.bf16.msra.mxu0 0
  %461 = vmatprep.subr.bf16.mxu0 0
  %462 = vmatpush1.bf16.msra.mxu0 0
  %463 = vmatprep.subr.bf16.mxu0 0
  %464 = vmatpush1.bf16.msra.mxu0 0
  %465 = vmatprep.mubr.bf16.mxu0 0
  %466 = vmatmul.mubr.bf16.gmra.mrb[0].mxu0 %v375
  %v467 = vpop.f32.mrb[0].mxu0
  %v468 = vadd.f32 %v334, %v467
  %v469 = vpop.f32.mrb[0].mxu0
  %v470 = vadd.f32 %v334, %v469
  %v471 = vpop.f32.mrb[0].mxu0
  %v472 = vadd.f32 %v339, %v471
  %v473 = vpop.f32.mrb[0].mxu0
  %v474 = vadd.f32 %v339, %v473
  %475 = vmatprep.mubr.bf16.mxu0 0
  %476 = vmatmul.mubr.bf16.gmra.mrb[0].mxu0 %v378
  %v477 = vpop.f32.mrb[0].mxu0
  %v478 = vadd.f32 %v344, %v477
  %v479 = vpop.f32.mrb[0].mxu0
  %v480 = vadd.f32 %v344, %v479
  %v481 = vpop.f32.mrb[0].mxu0
  %v482 = vadd.f32 %v349, %v481
  %v483 = vpop.f32.mrb[0].mxu0
  %v484 = vadd.f32 %v349, %v483
  %485 = vdwg.mxu0
  %486 = vmatprep.subr.bf16.mxu0 %v322
  %487 = vmatpush1.bf16.msra.mxu0 %v321
  %488 = vmatprep.subr.bf16.mxu0 0
  %489 = vmatpush1.bf16.msra.mxu0 0
  %490 = vmatprep.subr.bf16.mxu0 0
  %491 = vmatpush1.bf16.msra.mxu0 0
  %492 = vmatprep.subr.bf16.mxu0 0
  %493 = vmatpush1.bf16.msra.mxu0 0
  %494 = vmatprep.subr.bf16.mxu0 0
  %495 = vmatpush1.bf16.msra.mxu0 0
  %496 = vmatprep.subr.bf16.mxu0 0
  %497 = vmatpush1.bf16.msra.mxu0 0
  %498 = vmatprep.subr.bf16.mxu0 0
  %499 = vmatpush1.bf16.msra.mxu0 0
  %500 = vmatprep.subr.bf16.mxu0 0
  %501 = vmatpush1.bf16.msra.mxu0 0
  %502 = vmatprep.subr.bf16.mxu0 0
  %503 = vmatpush1.bf16.msra.mxu0 0
  %504 = vmatprep.subr.bf16.mxu0 0
  %505 = vmatpush1.bf16.msra.mxu0 0
  %506 = vmatprep.subr.bf16.mxu0 0
  %507 = vmatpush1.bf16.msra.mxu0 0
  %508 = vmatprep.subr.bf16.mxu0 0
  %509 = vmatpush1.bf16.msra.mxu0 0
  %510 = vmatprep.subr.bf16.mxu0 0
  %511 = vmatpush1.bf16.msra.mxu0 0
  %512 = vmatprep.subr.bf16.mxu0 0
  %513 = vmatpush1.bf16.msra.mxu0 0
  %514 = vmatprep.subr.bf16.mxu0 0
  %515 = vmatpush1.bf16.msra.mxu0 0
  %516 = vmatprep.subr.bf16.mxu0 0
  %517 = vmatpush1.bf16.msra.mxu0 0
  %518 = vmatprep.mubr.bf16.mxu0 0
  %519 = vmatmul.mubr.bf16.gmra.mrb[0].mxu0 %v375
  %v520 = vpop.f32.mrb[0].mxu0
  %v521 = vadd.f32 %v334, %v520
  %v522 = vpop.f32.mrb[0].mxu0
  %v523 = vadd.f32 %v334, %v522
  %v524 = vpop.f32.mrb[0].mxu0
  %v525 = vadd.f32 %v339, %v524
  %v526 = vpop.f32.mrb[0].mxu0
  %v527 = vadd.f32 %v339, %v526
  %528 = vmatprep.mubr.bf16.mxu0 0
  %529 = vmatmul.mubr.bf16.gmra.mrb[0].mxu0 %v378
  %v530 = vpop.f32.mrb[0].mxu0
  %v531 = vadd.f32 %v344, %v530
  %v532 = vpop.f32.mrb[0].mxu0
  %v533 = vadd.f32 %v344, %v532
  %v534 = vpop.f32.mrb[0].mxu0
  %v535 = vadd.f32 %v349, %v534
  %v536 = vpop.f32.mrb[0].mxu0
  %v537 = vadd.f32 %v349, %v536
  %538 = vdwg.mxu0
  %539 = vmatprep.subr.bf16.mxu0 %v324
  %540 = vmatpush1.bf16.msra.mxu0 %v323
  %541 = vmatprep.subr.bf16.mxu0 0
  %542 = vmatpush1.bf16.msra.mxu0 0
  %543 = vmatprep.subr.bf16.mxu0 0
  %544 = vmatpush1.bf16.msra.mxu0 0
  %545 = vmatprep.subr.bf16.mxu0 0
  %546 = vmatpush1.bf16.msra.mxu0 0
  %547 = vmatprep.subr.bf16.mxu0 0
  %548 = vmatpush1.bf16.msra.mxu0 0
  %549 = vmatprep.subr.bf16.mxu0 0
  %550 = vmatpush1.bf16.msra.mxu0 0
  %551 = vmatprep.subr.bf16.mxu0 0
  %552 = vmatpush1.bf16.msra.mxu0 0
  %553 = vmatprep.subr.bf16.mxu0 0
  %554 = vmatpush1.bf16.msra.mxu0 0
  %555 = vmatprep.subr.bf16.mxu0 0
  %556 = vmatpush1.bf16.msra.mxu0 0
  %557 = vmatprep.subr.bf16.mxu0 0
  %558 = vmatpush1.bf16.msra.mxu0 0
  %559 = vmatprep.subr.bf16.mxu0 0
  %560 = vmatpush1.bf16.msra.mxu0 0
  %561 = vmatprep.subr.bf16.mxu0 0
  %562 = vmatpush1.bf16.msra.mxu0 0
  %563 = vmatprep.subr.bf16.mxu0 0
  %564 = vmatpush1.bf16.msra.mxu0 0
  %565 = vmatprep.subr.bf16.mxu0 0
  %566 = vmatpush1.bf16.msra.mxu0 0
  %567 = vmatprep.subr.bf16.mxu0 0
  %568 = vmatpush1.bf16.msra.mxu0 0
  %569 = vmatprep.subr.bf16.mxu0 0
  %570 = vmatpush1.bf16.msra.mxu0 0
  %571 = vmatprep.mubr.bf16.mxu0 0
  %572 = vmatmul.mubr.bf16.gmra.mrb[0].mxu0 %v375
  %v573 = vpop.f32.mrb[0].mxu0
  %v574 = vadd.f32 %v334, %v573
  %v575 = vpop.f32.mrb[0].mxu0
  %v576 = vadd.f32 %v334, %v575
  %v577 = vpop.f32.mrb[0].mxu0
  %v578 = vadd.f32 %v339, %v577
  %v579 = vpop.f32.mrb[0].mxu0
  %v580 = vadd.f32 %v339, %v579
  %581 = vmatprep.mubr.bf16.mxu0 0
  %582 = vmatmul.mubr.bf16.gmra.mrb[0].mxu0 %v378
  %v583 = vpop.f32.mrb[0].mxu0
  %v584 = vadd.f32 %v344, %v583
  %v585 = vpop.f32.mrb[0].mxu0
  %v586 = vadd.f32 %v344, %v585
  %v587 = vpop.f32.mrb[0].mxu0
  %v588 = vadd.f32 %v349, %v587
  %v589 = vpop.f32.mrb[0].mxu0
  %v590 = vadd.f32 %v349, %v589
  %591 = vdwg.mxu0
  %v592 = vmax.f32 %v415, 0.0
  %v593 = vmax.f32 %v417, 0.0
  %v594 = vmax.f32 %v468, 0.0
  %v595 = vmax.f32 %v470, 0.0
  %v596 = vmax.f32 %v521, 0.0
  %v597 = vmax.f32 %v523, 0.0
  %v598 = vmax.f32 %v574, 0.0
  %v599 = vmax.f32 %v576, 0.0
  %v600 = vmax.f32 %v419, 0.0
  %v601 = vmax.f32 %v421, 0.0
  %v602 = vmax.f32 %v472, 0.0
  %v603 = vmax.f32 %v474, 0.0
  %v604 = vmax.f32 %v525, 0.0
  %v605 = vmax.f32 %v527, 0.0
  %v606 = vmax.f32 %v578, 0.0
  %v607 = vmax.f32 %v580, 0.0
  %v608 = vmax.f32 %v425, 0.0
  %v609 = vmax.f32 %v427, 0.0
  %v610 = vmax.f32 %v478, 0.0
  %v611 = vmax.f32 %v480, 0.0
  %v612 = vmax.f32 %v531, 0.0
  %v613 = vmax.f32 %v533, 0.0
  %v614 = vmax.f32 %v584, 0.0
  %v615 = vmax.f32 %v586, 0.0
  %v616 = vmax.f32 %v429, 0.0
  %v617 = vmax.f32 %v431, 0.0
  %v618 = vmax.f32 %v482, 0.0
  %v619 = vmax.f32 %v484, 0.0
  %v620 = vmax.f32 %v535, 0.0
  %v621 = vmax.f32 %v537, 0.0
  %v622 = vmax.f32 %v588, 0.0
  %v623 = vmax.f32 %v590, 0.0
  %v624 = vmax.f32 %v592, %v593
  %v625 = vmax.f32 %v600, %v601
  %v626 = vmax.f32 %v608, %v609
  %v627 = vmax.f32 %v616, %v617
  %v628 = vmax.f32 %v624, %v594
  %v629 = vmax.f32 %v625, %v602
  %v630 = vmax.f32 %v626, %v610
  %v631 = vmax.f32 %v627, %v618
  %v632 = vmax.f32 %v628, %v595
  %v633 = vmax.f32 %v629, %v603
  %v634 = vmax.f32 %v630, %v611
  %v635 = vmax.f32 %v631, %v619
  %v636 = vmax.f32 %v632, %v596
  %v637 = vmax.f32 %v633, %v604
  %v638 = vmax.f32 %v634, %v612
  %v639 = vmax.f32 %v635, %v620
  %v640 = vmax.f32 %v636, %v597
  %v641 = vmax.f32 %v637, %v605
  %v642 = vmax.f32 %v638, %v613
  %v643 = vmax.f32 %v639, %v621
  %v644 = vmax.f32 %v640, %v598
  %v645 = vmax.f32 %v641, %v606
  %v646 = vmax.f32 %v642, %v614
  %v647 = vmax.f32 %v643, %v622
  %v648 = vmax.f32 %v644, %v599
  %v649 = vmax.f32 %v645, %v607
  %v650 = vmax.f32 %v646, %v615
  %v651 = vmax.f32 %v647, %v623
  %652 = vst [vmem:[%s5] sm:$0xff] %v648
  %653 = vst [vmem:[%s5 + $0x8] sm:$0xff] %v649
  %654 = vst [vmem:[%s5 + $0x10] sm:$0xff] %v650
  %655 = vst [vmem:[%s5 + $0x18] sm:$0xff] %v651
  // Predicated region
  $region22: #{a_call__.2} parent=0 // pred_check
    _
  $region23: #{a_call__.2} parent=0 // pred_check_branch
    %657 = sbr.rel (0) target = $region25
  $region24: #{a_call__.2} parent=0 // pred_region
    _
  $region25: #{a_call__.2} parent=0 // pred_fallthru
    _
  // Predicated region
  $region26: #{a_call__.2} parent=0 // pred_check
    _
  $region27: #{a_call__.2} parent=0 // pred_check_branch
    %659 = sbr.rel (0) target = $region29
  $region28: #{a_call__.2} parent=0 // pred_region
    _
  $region29: #{a_call__.2} parent=0 // pred_fallthru
    _

// kernel: a_call__.3
$region0: #{a_call__.3}
  #allocation0 [shape = 'u32[]', space=smem, size = 0x4, offset = 0x4, fixed_abs, tag = 'smem constant byte address 0x4 - core index']
  #allocation1 [shape = 'u32[144,128]{1,0:T(1,128)}', space=vmem, size = 0x12000, scoped, tag = 'internal scratch']
  %s0 = inlined_call_operand.vmem [shape: bf16[9,2048], index: 0, kind: input, shape index: {}]
  %s1 = inlined_call_operand.vmem [shape: bf16[9,16], index: 1, kind: input, shape index: {}]
  %s2 = inlined_call_operand.vmem [shape: f32[16,1], index: 2, kind: input, shape index: {}]
  %s3 = inlined_call_operand.vmem [shape: bf16[16,32], index: 3, kind: input, shape index: {}]
  %s4 = inlined_call_operand.vmem [shape: f32[32,1], index: 4, kind: input, shape index: {}]
  %s5 = inlined_call_operand.vmem [shape: f32[32,128], index: 5, kind: output, shape index: {}]
  %s6 = sld [smem:[#allocation0]]
  $region30: #{a_call__.3} parent=0
    _
  %s8 = ssub.s32 1, %s6
  %s9 = scalar_select 0, %s8, %s6
  // Predicated region
  $region2: #{a_call__.3} parent=0 // pred_check
    _
  $region3: #{a_call__.3} parent=0 // pred_check_branch
    %11 = sbr.rel (0) target = $region5
  $region4: #{a_call__.3} parent=0 // pred_region
    _
  $region5: #{a_call__.3} parent=0 // pred_fallthru
    _
  // Predicated region
  $region6: #{a_call__.3} parent=0 // pred_check
    _
  $region7: #{a_call__.3} parent=0 // pred_check_branch
    %13 = sbr.rel (0) target = $region9
  $region8: #{a_call__.3} parent=0 // pred_region
    _
  $region9: #{a_call__.3} parent=0 // pred_fallthru
    _
  // Predicated region
  $region10: #{a_call__.3} parent=0 // pred_check
    _
  $region11: #{a_call__.3} parent=0 // pred_check_branch
    %15 = sbr.rel (0) target = $region13
  $region12: #{a_call__.3} parent=0 // pred_region
    _
  $region13: #{a_call__.3} parent=0 // pred_fallthru
    _
  // Predicated region
  $region14: #{a_call__.3} parent=0 // pred_check
    _
  $region15: #{a_call__.3} parent=0 // pred_check_branch
    %17 = sbr.rel (0) target = $region17
  $region16: #{a_call__.3} parent=0 // pred_region
    _
  $region17: #{a_call__.3} parent=0 // pred_fallthru
    _
  // Predicated region
  $region18: #{a_call__.3} parent=0 // pred_check
    _
  $region19: #{a_call__.3} parent=0 // pred_check_branch
    %19 = sbr.rel (0) target = $region21
  $region20: #{a_call__.3} parent=0 // pred_region
    _
  $region21: #{a_call__.3} parent=0 // pred_fallthru
    _
  %v21 = vld [vmem:[%s0] sm:$0xff]
  %v22 = vld [vmem:[%s0 + $0x8] sm:$0xff]
  %v23 = vld [vmem:[%s0 + $0x10] sm:$0xff]
  %v24 = vld [vmem:[%s0 + $0x18] sm:$0xff]
  %v25 = vld [vmem:[%s0 + $0x20] sm:$0xff]
  %v26 = vld [vmem:[%s0 + $0x28] sm:$0xff]
  %v27 = vld [vmem:[%s0 + $0x30] sm:$0xff]
  %v28 = vld [vmem:[%s0 + $0x38] sm:$0xff]
  %v29 = vld [vmem:[%s0 + $0x40] sm:$0x11]
  %v30 = vld [vmem:[%s0 + $0x48] sm:$0x11]
  %v31 = vld [vmem:[%s0 + $0x50] sm:$0x11]
  %v32 = vld [vmem:[%s0 + $0x58] sm:$0x11]
  %v33 = vld [vmem:[%s0 + $0x60] sm:$0x11]
  %v34 = vld [vmem:[%s0 + $0x68] sm:$0x11]
  %v35 = vld [vmem:[%s0 + $0x70] sm:$0x11]
  %v36 = vld [vmem:[%s0 + $0x78] sm:$0x11]
  %v37 = vld [vmem:[%s1] sm:$0xf]
  %v38 = vld [vmem:[%s1 + $0x4] sm:$0x1]
  %v39 = vld [vmem:[%s2] sm:$0xff]
  %v40 = vld [vmem:[%s2 + $0x8] sm:$0xff]
  %42 = vset.pattern.permute.xlu0 0
  %43 = vperm.xlu0 %42, %v39
  %v44 = vpop.permute.xlu0 %43
  %47 = vset.pattern.permute.xlu0 0
  %48 = vperm.xlu0 %47, %v40
  %v49 = vpop.permute.xlu0 %48
  %v53 = vunpack.c.l.b16 %v37
  %v54 = vunpack.c.l.b16 %v38
  %v55 = vpack.c.b16 %v54, %v53
  %57 = vxpose.xlu0.c.b16.start [1/8] %v55, 128
  %58 = vxpose.xlu0.c.b16.cont [2/8] 0, 128
  %59 = vxpose.xlu0.c.b16.cont [3/8] 0, 128
  %60 = vxpose.xlu0.c.b16.cont [4/8] 0, 128
  %61 = vxpose.xlu0.c.b16.cont [5/8] 0, 128
  %62 = vxpose.xlu0.c.b16.cont [6/8] 0, 128
  %63 = vxpose.xlu0.c.b16.cont [7/8] 0, 128
  %64 = vxpose.xlu0.c.b16.end [8/8] 0, 128
  %v65 = vpop.trf.xlu0
  %v66 = vpop.trf.xlu0
  %v67 = vpop.trf.xlu0
  %v68 = vpop.trf.xlu0
  %v69 = vpop.trf.xlu0
  %v70 = vpop.trf.xlu0
  %v71 = vpop.trf.xlu0
  %v72 = vpop.trf.xlu0
  %v89 = vunpack.c.l.b16 %v21
  %v90 = vunpack.c.h.b16 %v21
  %v91 = vunpack.c.l.b16 %v22
  %v92 = vunpack.c.h.b16 %v22
  %v93 = vunpack.c.l.b16 %v23
  %v94 = vunpack.c.h.b16 %v23
  %v95 = vunpack.c.l.b16 %v24
  %v96 = vunpack.c.h.b16 %v24
  %v97 = vunpack.c.l.b16 %v25
  %v98 = vunpack.c.h.b16 %v25
  %v99 = vunpack.c.l.b16 %v26
  %v100 = vunpack.c.h.b16 %v26
  %v101 = vunpack.c.l.b16 %v27
  %v102 = vunpack.c.h.b16 %v27
  %v103 = vunpack.c.l.b16 %v28
  %v104 = vunpack.c.h.b16 %v28
  %v105 = vunpack.c.l.b16 %v29
  %v106 = vunpack.c.h.b16 %v29
  %v107 = vunpack.c.l.b16 %v30
  %v108 = vunpack.c.h.b16 %v30
  %v109 = vunpack.c.l.b16 %v31
  %v110 = vunpack.c.h.b16 %v31
  %v111 = vunpack.c.l.b16 %v32
  %v112 = vunpack.c.h.b16 %v32
  %v113 = vunpack.c.l.b16 %v33
  %v114 = vunpack.c.h.b16 %v33
  %v115 = vunpack.c.l.b16 %v34
  %v116 = vunpack.c.h.b16 %v34
  %v117 = vunpack.c.l.b16 %v35
  %v118 = vunpack.c.h.b16 %v35
  %v119 = vunpack.c.l.b16 %v36
  %v120 = vunpack.c.h.b16 %v36
  %v121 = vpack.c.b16 %v105, %v89
  %v122 = vpack.c.b16 %v106, %v90
  %v123 = vpack.c.b16 %v107, %v91
  %v124 = vpack.c.b16 %v108, %v92
  %v125 = vpack.c.b16 %v109, %v93
  %v126 = vpack.c.b16 %v110, %v94
  %v127 = vpack.c.b16 %v111, %v95
  %v128 = vpack.c.b16 %v112, %v96
  %v129 = vpack.c.b16 %v113, %v97
  %v130 = vpack.c.b16 %v114, %v98
  %v131 = vpack.c.b16 %v115, %v99
  %v132 = vpack.c.b16 %v116, %v100
  %v133 = vpack.c.b16 %v117, %v101
  %v134 = vpack.c.b16 %v118, %v102
  %v135 = vpack.c.b16 %v119, %v103
  %v136 = vpack.c.b16 %v120, %v104
  %vm137 = vcmask 72704
  %v139 = vsel %vm137, %v65, 0
  %vm141 = vcmask 1043456
  %vm142 = vcmask 1044480
  %v143 = vsel %vm141, 4294967295, 65535
  %v144 = vsel %vm142, %v143, 0
  %v146 = vand.u32 %v121, %v144
  %v149 = vand.u32 %v122, %v144
  %v152 = vand.u32 %v123, %v144
  %v155 = vand.u32 %v124, %v144
  %v158 = vand.u32 %v125, %v144
  %v161 = vand.u32 %v126, %v144
  %v164 = vand.u32 %v127, %v144
  %v167 = vand.u32 %v128, %v144
  %v170 = vand.u32 %v129, %v144
  %v173 = vand.u32 %v130, %v144
  %v176 = vand.u32 %v131, %v144
  %v179 = vand.u32 %v132, %v144
  %v182 = vand.u32 %v133, %v144
  %v185 = vand.u32 %v134, %v144
  %v188 = vand.u32 %v135, %v144
  %v191 = vand.u32 %v136, %v144
  %193 = vmatprep.subr.bf16.mxu0 %v149
  %194 = vmatpush1.bf16.msra.mxu0 %v146
  %195 = vmatprep.subr.bf16.mxu0 0
  %196 = vmatpush1.bf16.msra.mxu0 0
  %197 = vmatprep.subr.bf16.mxu0 0
  %198 = vmatpush1.bf16.msra.mxu0 0
  %199 = vmatprep.subr.bf16.mxu0 0
  %200 = vmatpush1.bf16.msra.mxu0 0
  %201 = vmatprep.subr.bf16.mxu0 0
  %202 = vmatpush1.bf16.msra.mxu0 0
  %203 = vmatprep.subr.bf16.mxu0 0
  %204 = vmatpush1.bf16.msra.mxu0 0
  %205 = vmatprep.subr.bf16.mxu0 0
  %206 = vmatpush1.bf16.msra.mxu0 0
  %207 = vmatprep.subr.bf16.mxu0 0
  %208 = vmatpush1.bf16.msra.mxu0 0
  %209 = vmatprep.subr.bf16.mxu0 0
  %210 = vmatpush1.bf16.msra.mxu0 0
  %211 = vmatprep.subr.bf16.mxu0 0
  %212 = vmatpush1.bf16.msra.mxu0 0
  %213 = vmatprep.subr.bf16.mxu0 0
  %214 = vmatpush1.bf16.msra.mxu0 0
  %215 = vmatprep.subr.bf16.mxu0 0
  %216 = vmatpush1.bf16.msra.mxu0 0
  %217 = vmatprep.subr.bf16.mxu0 0
  %218 = vmatpush1.bf16.msra.mxu0 0
  %219 = vmatprep.subr.bf16.mxu0 0
  %220 = vmatpush1.bf16.msra.mxu0 0
  %221 = vmatprep.subr.bf16.mxu0 0
  %222 = vmatpush1.bf16.msra.mxu0 0
  %223 = vmatprep.subr.bf16.mxu0 0
  %224 = vmatpush1.bf16.msra.mxu0 0
  %225 = vmatprep.mubr.bf16.mxu0 0
  %226 = vmatmul.mubr.bf16.gmra.mrb[0].mxu0 %v139
  %v227 = vpop.f32.mrb[0].mxu0
  %v228 = vadd.f32 %v44, %v227
  %v229 = vpop.f32.mrb[0].mxu0
  %v230 = vadd.f32 %v44, %v229
  %v231 = vpop.f32.mrb[0].mxu0
  %v232 = vadd.f32 %v49, %v231
  %v233 = vpop.f32.mrb[0].mxu0
  %v234 = vadd.f32 %v49, %v233
  %235 = vdwg.mxu0
  %236 = vmatprep.subr.bf16.mxu0 %v155
  %237 = vmatpush1.bf16.msra.mxu0 %v152
  %238 = vmatprep.subr.bf16.mxu0 0
  %239 = vmatpush1.bf16.msra.mxu0 0
  %240 = vmatprep.subr.bf16.mxu0 0
  %241 = vmatpush1.bf16.msra.mxu0 0
  %242 = vmatprep.subr.bf16.mxu0 0
  %243 = vmatpush1.bf16.msra.mxu0 0
  %244 = vmatprep.subr.bf16.mxu0 0
  %245 = vmatpush1.bf16.msra.mxu0 0
  %246 = vmatprep.subr.bf16.mxu0 0
  %247 = vmatpush1.bf16.msra.mxu0 0
  %248 = vmatprep.subr.bf16.mxu0 0
  %249 = vmatpush1.bf16.msra.mxu0 0
  %250 = vmatprep.subr.bf16.mxu0 0
  %251 = vmatpush1.bf16.msra.mxu0 0
  %252 = vmatprep.subr.bf16.mxu0 0
  %253 = vmatpush1.bf16.msra.mxu0 0
  %254 = vmatprep.subr.bf16.mxu0 0
  %255 = vmatpush1.bf16.msra.mxu0 0
  %256 = vmatprep.subr.bf16.mxu0 0
  %257 = vmatpush1.bf16.msra.mxu0 0
  %258 = vmatprep.subr.bf16.mxu0 0
  %259 = vmatpush1.bf16.msra.mxu0 0
  %260 = vmatprep.subr.bf16.mxu0 0
  %261 = vmatpush1.bf16.msra.mxu0 0
  %262 = vmatprep.subr.bf16.mxu0 0
  %263 = vmatpush1.bf16.msra.mxu0 0
  %264 = vmatprep.subr.bf16.mxu0 0
  %265 = vmatpush1.bf16.msra.mxu0 0
  %266 = vmatprep.subr.bf16.mxu0 0
  %267 = vmatpush1.bf16.msra.mxu0 0
  %268 = vmatprep.mubr.bf16.mxu0 0
  %269 = vmatmul.mubr.bf16.gmra.mrb[0].mxu0 %v139
  %v270 = vpop.f32.mrb[0].mxu0
  %v271 = vadd.f32 %v44, %v270
  %v272 = vpop.f32.mrb[0].mxu0
  %v273 = vadd.f32 %v44, %v272
  %v274 = vpop.f32.mrb[0].mxu0
  %v275 = vadd.f32 %v49, %v274
  %v276 = vpop.f32.mrb[0].mxu0
  %v277 = vadd.f32 %v49, %v276
  %278 = vdwg.mxu0
  %279 = vmatprep.subr.bf16.mxu0 %v161
  %280 = vmatpush1.bf16.msra.mxu0 %v158
  %281 = vmatprep.subr.bf16.mxu0 0
  %282 = vmatpush1.bf16.msra.mxu0 0
  %283 = vmatprep.subr.bf16.mxu0 0
  %284 = vmatpush1.bf16.msra.mxu0 0
  %285 = vmatprep.subr.bf16.mxu0 0
  %286 = vmatpush1.bf16.msra.mxu0 0
  %287 = vmatprep.subr.bf16.mxu0 0
  %288 = vmatpush1.bf16.msra.mxu0 0
  %289 = vmatprep.subr.bf16.mxu0 0
  %290 = vmatpush1.bf16.msra.mxu0 0
  %291 = vmatprep.subr.bf16.mxu0 0
  %292 = vmatpush1.bf16.msra.mxu0 0
  %293 = vmatprep.subr.bf16.mxu0 0
  %294 = vmatpush1.bf16.msra.mxu0 0
  %295 = vmatprep.subr.bf16.mxu0 0
  %296 = vmatpush1.bf16.msra.mxu0 0
  %297 = vmatprep.subr.bf16.mxu0 0
  %298 = vmatpush1.bf16.msra.mxu0 0
  %299 = vmatprep.subr.bf16.mxu0 0
  %300 = vmatpush1.bf16.msra.mxu0 0
  %301 = vmatprep.subr.bf16.mxu0 0
  %302 = vmatpush1.bf16.msra.mxu0 0
  %303 = vmatprep.subr.bf16.mxu0 0
  %304 = vmatpush1.bf16.msra.mxu0 0
  %305 = vmatprep.subr.bf16.mxu0 0
  %306 = vmatpush1.bf16.msra.mxu0 0
  %307 = vmatprep.subr.bf16.mxu0 0
  %308 = vmatpush1.bf16.msra.mxu0 0
  %309 = vmatprep.subr.bf16.mxu0 0
  %310 = vmatpush1.bf16.msra.mxu0 0
  %311 = vmatprep.mubr.bf16.mxu0 0
  %312 = vmatmul.mubr.bf16.gmra.mrb[0].mxu0 %v139
  %v313 = vpop.f32.mrb[0].mxu0
  %v314 = vadd.f32 %v44, %v313
  %v315 = vpop.f32.mrb[0].mxu0
  %v316 = vadd.f32 %v44, %v315
  %v317 = vpop.f32.mrb[0].mxu0
  %v318 = vadd.f32 %v49, %v317
  %v319 = vpop.f32.mrb[0].mxu0
  %v320 = vadd.f32 %v49, %v319
  %321 = vdwg.mxu0
  %322 = vmatprep.subr.bf16.mxu0 %v167
  %323 = vmatpush1.bf16.msra.mxu0 %v164
  %324 = vmatprep.subr.bf16.mxu0 0
  %325 = vmatpush1.bf16.msra.mxu0 0
  %326 = vmatprep.subr.bf16.mxu0 0
  %327 = vmatpush1.bf16.msra.mxu0 0
  %328 = vmatprep.subr.bf16.mxu0 0
  %329 = vmatpush1.bf16.msra.mxu0 0
  %330 = vmatprep.subr.bf16.mxu0 0
  %331 = vmatpush1.bf16.msra.mxu0 0
  %332 = vmatprep.subr.bf16.mxu0 0
  %333 = vmatpush1.bf16.msra.mxu0 0
  %334 = vmatprep.subr.bf16.mxu0 0
  %335 = vmatpush1.bf16.msra.mxu0 0
  %336 = vmatprep.subr.bf16.mxu0 0
  %337 = vmatpush1.bf16.msra.mxu0 0
  %338 = vmatprep.subr.bf16.mxu0 0
  %339 = vmatpush1.bf16.msra.mxu0 0
  %340 = vmatprep.subr.bf16.mxu0 0
  %341 = vmatpush1.bf16.msra.mxu0 0
  %342 = vmatprep.subr.bf16.mxu0 0
  %343 = vmatpush1.bf16.msra.mxu0 0
  %344 = vmatprep.subr.bf16.mxu0 0
  %345 = vmatpush1.bf16.msra.mxu0 0
  %346 = vmatprep.subr.bf16.mxu0 0
  %347 = vmatpush1.bf16.msra.mxu0 0
  %348 = vmatprep.subr.bf16.mxu0 0
  %349 = vmatpush1.bf16.msra.mxu0 0
  %350 = vmatprep.subr.bf16.mxu0 0
  %351 = vmatpush1.bf16.msra.mxu0 0
  %352 = vmatprep.subr.bf16.mxu0 0
  %353 = vmatpush1.bf16.msra.mxu0 0
  %354 = vmatprep.mubr.bf16.mxu0 0
  %355 = vmatmul.mubr.bf16.gmra.mrb[0].mxu0 %v139
  %v356 = vpop.f32.mrb[0].mxu0
  %v357 = vadd.f32 %v44, %v356
  %v358 = vpop.f32.mrb[0].mxu0
  %v359 = vadd.f32 %v44, %v358
  %v360 = vpop.f32.mrb[0].mxu0
  %v361 = vadd.f32 %v49, %v360
  %v362 = vpop.f32.mrb[0].mxu0
  %v363 = vadd.f32 %v49, %v362
  %364 = vdwg.mxu0
  %365 = vmatprep.subr.bf16.mxu0 %v173
  %366 = vmatpush1.bf16.msra.mxu0 %v170
  %367 = vmatprep.subr.bf16.mxu0 0
  %368 = vmatpush1.bf16.msra.mxu0 0
  %369 = vmatprep.subr.bf16.mxu0 0
  %370 = vmatpush1.bf16.msra.mxu0 0
  %371 = vmatprep.subr.bf16.mxu0 0
  %372 = vmatpush1.bf16.msra.mxu0 0
  %373 = vmatprep.subr.bf16.mxu0 0
  %374 = vmatpush1.bf16.msra.mxu0 0
  %375 = vmatprep.subr.bf16.mxu0 0
  %376 = vmatpush1.bf16.msra.mxu0 0
  %377 = vmatprep.subr.bf16.mxu0 0
  %378 = vmatpush1.bf16.msra.mxu0 0
  %379 = vmatprep.subr.bf16.mxu0 0
  %380 = vmatpush1.bf16.msra.mxu0 0
  %381 = vmatprep.subr.bf16.mxu0 0
  %382 = vmatpush1.bf16.msra.mxu0 0
  %383 = vmatprep.subr.bf16.mxu0 0
  %384 = vmatpush1.bf16.msra.mxu0 0
  %385 = vmatprep.subr.bf16.mxu0 0
  %386 = vmatpush1.bf16.msra.mxu0 0
  %387 = vmatprep.subr.bf16.mxu0 0
  %388 = vmatpush1.bf16.msra.mxu0 0
  %389 = vmatprep.subr.bf16.mxu0 0
  %390 = vmatpush1.bf16.msra.mxu0 0
  %391 = vmatprep.subr.bf16.mxu0 0
  %392 = vmatpush1.bf16.msra.mxu0 0
  %393 = vmatprep.subr.bf16.mxu0 0
  %394 = vmatpush1.bf16.msra.mxu0 0
  %395 = vmatprep.subr.bf16.mxu0 0
  %396 = vmatpush1.bf16.msra.mxu0 0
  %397 = vmatprep.mubr.bf16.mxu0 0
  %398 = vmatmul.mubr.bf16.gmra.mrb[0].mxu0 %v139
  %v399 = vpop.f32.mrb[0].mxu0
  %v400 = vadd.f32 %v44, %v399
  %v401 = vpop.f32.mrb[0].mxu0
  %v402 = vadd.f32 %v44, %v401
  %v403 = vpop.f32.mrb[0].mxu0
  %v404 = vadd.f32 %v49, %v403
  %v405 = vpop.f32.mrb[0].mxu0
  %v406 = vadd.f32 %v49, %v405
  %407 = vdwg.mxu0
  %408 = vmatprep.subr.bf16.mxu0 %v179
  %409 = vmatpush1.bf16.msra.mxu0 %v176
  %410 = vmatprep.subr.bf16.mxu0 0
  %411 = vmatpush1.bf16.msra.mxu0 0
  %412 = vmatprep.subr.bf16.mxu0 0
  %413 = vmatpush1.bf16.msra.mxu0 0
  %414 = vmatprep.subr.bf16.mxu0 0
  %415 = vmatpush1.bf16.msra.mxu0 0
  %416 = vmatprep.subr.bf16.mxu0 0
  %417 = vmatpush1.bf16.msra.mxu0 0
  %418 = vmatprep.subr.bf16.mxu0 0
  %419 = vmatpush1.bf16.msra.mxu0 0
  %420 = vmatprep.subr.bf16.mxu0 0
  %421 = vmatpush1.bf16.msra.mxu0 0
  %422 = vmatprep.subr.bf16.mxu0 0
  %423 = vmatpush1.bf16.msra.mxu0 0
  %424 = vmatprep.subr.bf16.mxu0 0
  %425 = vmatpush1.bf16.msra.mxu0 0
  %426 = vmatprep.subr.bf16.mxu0 0
  %427 = vmatpush1.bf16.msra.mxu0 0
  %428 = vmatprep.subr.bf16.mxu0 0
  %429 = vmatpush1.bf16.msra.mxu0 0
  %430 = vmatprep.subr.bf16.mxu0 0
  %431 = vmatpush1.bf16.msra.mxu0 0
  %432 = vmatprep.subr.bf16.mxu0 0
  %433 = vmatpush1.bf16.msra.mxu0 0
  %434 = vmatprep.subr.bf16.mxu0 0
  %435 = vmatpush1.bf16.msra.mxu0 0
  %436 = vmatprep.subr.bf16.mxu0 0
  %437 = vmatpush1.bf16.msra.mxu0 0
  %438 = vmatprep.subr.bf16.mxu0 0
  %439 = vmatpush1.bf16.msra.mxu0 0
  %440 = vmatprep.mubr.bf16.mxu0 0
  %441 = vmatmul.mubr.bf16.gmra.mrb[0].mxu0 %v139
  %v442 = vpop.f32.mrb[0].mxu0
  %v443 = vadd.f32 %v44, %v442
  %v444 = vpop.f32.mrb[0].mxu0
  %v445 = vadd.f32 %v44, %v444
  %v446 = vpop.f32.mrb[0].mxu0
  %v447 = vadd.f32 %v49, %v446
  %v448 = vpop.f32.mrb[0].mxu0
  %v449 = vadd.f32 %v49, %v448
  %450 = vdwg.mxu0
  %451 = vmatprep.subr.bf16.mxu0 %v185
  %452 = vmatpush1.bf16.msra.mxu0 %v182
  %453 = vmatprep.subr.bf16.mxu0 0
  %454 = vmatpush1.bf16.msra.mxu0 0
  %455 = vmatprep.subr.bf16.mxu0 0
  %456 = vmatpush1.bf16.msra.mxu0 0
  %457 = vmatprep.subr.bf16.mxu0 0
  %458 = vmatpush1.bf16.msra.mxu0 0
  %459 = vmatprep.subr.bf16.mxu0 0
  %460 = vmatpush1.bf16.msra.mxu0 0
  %461 = vmatprep.subr.bf16.mxu0 0
  %462 = vmatpush1.bf16.msra.mxu0 0
  %463 = vmatprep.subr.bf16.mxu0 0
  %464 = vmatpush1.bf16.msra.mxu0 0
  %465 = vmatprep.subr.bf16.mxu0 0
  %466 = vmatpush1.bf16.msra.mxu0 0
  %467 = vmatprep.subr.bf16.mxu0 0
  %468 = vmatpush1.bf16.msra.mxu0 0
  %469 = vmatprep.subr.bf16.mxu0 0
  %470 = vmatpush1.bf16.msra.mxu0 0
  %471 = vmatprep.subr.bf16.mxu0 0
  %472 = vmatpush1.bf16.msra.mxu0 0
  %473 = vmatprep.subr.bf16.mxu0 0
  %474 = vmatpush1.bf16.msra.mxu0 0
  %475 = vmatprep.subr.bf16.mxu0 0
  %476 = vmatpush1.bf16.msra.mxu0 0
  %477 = vmatprep.subr.bf16.mxu0 0
  %478 = vmatpush1.bf16.msra.mxu0 0
  %479 = vmatprep.subr.bf16.mxu0 0
  %480 = vmatpush1.bf16.msra.mxu0 0
  %481 = vmatprep.subr.bf16.mxu0 0
  %482 = vmatpush1.bf16.msra.mxu0 0
  %483 = vmatprep.mubr.bf16.mxu0 0
  %484 = vmatmul.mubr.bf16.gmra.mrb[0].mxu0 %v139
  %v485 = vpop.f32.mrb[0].mxu0
  %v486 = vadd.f32 %v44, %v485
  %v487 = vpop.f32.mrb[0].mxu0
  %v488 = vadd.f32 %v44, %v487
  %v489 = vpop.f32.mrb[0].mxu0
  %v490 = vadd.f32 %v49, %v489
  %v491 = vpop.f32.mrb[0].mxu0
  %v492 = vadd.f32 %v49, %v491
  %493 = vdwg.mxu0
  %494 = vmatprep.subr.bf16.mxu0 %v191
  %495 = vmatpush1.bf16.msra.mxu0 %v188
  %496 = vmatprep.subr.bf16.mxu0 0
  %497 = vmatpush1.bf16.msra.mxu0 0
  %498 = vmatprep.subr.bf16.mxu0 0
  %499 = vmatpush1.bf16.msra.mxu0 0
  %500 = vmatprep.subr.bf16.mxu0 0
  %501 = vmatpush1.bf16.msra.mxu0 0
  %502 = vmatprep.subr.bf16.mxu0 0
  %503 = vmatpush1.bf16.msra.mxu0 0
  %504 = vmatprep.subr.bf16.mxu0 0
  %505 = vmatpush1.bf16.msra.mxu0 0
  %506 = vmatprep.subr.bf16.mxu0 0
  %507 = vmatpush1.bf16.msra.mxu0 0
  %508 = vmatprep.subr.bf16.mxu0 0
  %509 = vmatpush1.bf16.msra.mxu0 0
  %510 = vmatprep.subr.bf16.mxu0 0
  %511 = vmatpush1.bf16.msra.mxu0 0
  %512 = vmatprep.subr.bf16.mxu0 0
  %513 = vmatpush1.bf16.msra.mxu0 0
  %514 = vmatprep.subr.bf16.mxu0 0
  %515 = vmatpush1.bf16.msra.mxu0 0
  %516 = vmatprep.subr.bf16.mxu0 0
  %517 = vmatpush1.bf16.msra.mxu0 0
  %518 = vmatprep.subr.bf16.mxu0 0
  %519 = vmatpush1.bf16.msra.mxu0 0
  %520 = vmatprep.subr.bf16.mxu0 0
  %521 = vmatpush1.bf16.msra.mxu0 0
  %522 = vmatprep.subr.bf16.mxu0 0
  %523 = vmatpush1.bf16.msra.mxu0 0
  %524 = vmatprep.subr.bf16.mxu0 0
  %525 = vmatpush1.bf16.msra.mxu0 0
  %526 = vmatprep.mubr.bf16.mxu0 0
  %527 = vmatmul.mubr.bf16.gmra.mrb[0].mxu0 %v139
  %v528 = vpop.f32.mrb[0].mxu0
  %v529 = vadd.f32 %v44, %v528
  %v530 = vpop.f32.mrb[0].mxu0
  %v531 = vadd.f32 %v44, %v530
  %v532 = vpop.f32.mrb[0].mxu0
  %v533 = vadd.f32 %v49, %v532
  %v534 = vpop.f32.mrb[0].mxu0
  %v535 = vadd.f32 %v49, %v534
  %536 = vdwg.mxu0
  %v537 = vmax.f32 %v228, 0.0
  %v538 = vmax.f32 %v230, 0.0
  %v539 = vmax.f32 %v271, 0.0
  %v540 = vmax.f32 %v273, 0.0
  %v541 = vmax.f32 %v314, 0.0
  %v542 = vmax.f32 %v316, 0.0
  %v543 = vmax.f32 %v357, 0.0
  %v544 = vmax.f32 %v359, 0.0
  %v545 = vmax.f32 %v400, 0.0
  %v546 = vmax.f32 %v402, 0.0
  %v547 = vmax.f32 %v443, 0.0
  %v548 = vmax.f32 %v445, 0.0
  %v549 = vmax.f32 %v486, 0.0
  %v550 = vmax.f32 %v488, 0.0
  %v551 = vmax.f32 %v529, 0.0
  %v552 = vmax.f32 %v531, 0.0
  %v553 = vmax.f32 %v232, 0.0
  %v554 = vmax.f32 %v234, 0.0
  %v555 = vmax.f32 %v275, 0.0
  %v556 = vmax.f32 %v277, 0.0
  %v557 = vmax.f32 %v318, 0.0
  %v558 = vmax.f32 %v320, 0.0
  %v559 = vmax.f32 %v361, 0.0
  %v560 = vmax.f32 %v363, 0.0
  %v561 = vmax.f32 %v404, 0.0
  %v562 = vmax.f32 %v406, 0.0
  %v563 = vmax.f32 %v447, 0.0
  %v564 = vmax.f32 %v449, 0.0
  %v565 = vmax.f32 %v490, 0.0
  %v566 = vmax.f32 %v492, 0.0
  %v567 = vmax.f32 %v533, 0.0
  %v568 = vmax.f32 %v535, 0.0
  %v569 = vpack.c.bf16 %v553, %v537
  %v570 = vpack.c.bf16 %v554, %v538
  %v571 = vpack.c.bf16 %v555, %v539
  %v572 = vpack.c.bf16 %v556, %v540
  %v573 = vpack.c.bf16 %v557, %v541
  %v574 = vpack.c.bf16 %v558, %v542
  %v575 = vpack.c.bf16 %v559, %v543
  %v576 = vpack.c.bf16 %v560, %v544
  %v577 = vpack.c.bf16 %v561, %v545
  %v578 = vpack.c.bf16 %v562, %v546
  %v579 = vpack.c.bf16 %v563, %v547
  %v580 = vpack.c.bf16 %v564, %v548
  %v581 = vpack.c.bf16 %v565, %v549
  %v582 = vpack.c.bf16 %v566, %v550
  %v583 = vpack.c.bf16 %v567, %v551
  %v584 = vpack.c.bf16 %v568, %v552
  %v585 = vld [vmem:[%s3] sm:$0xf]
  %v586 = vld [vmem:[%s3 + $0x4] sm:$0xf]
  %v587 = vld [vmem:[%s4] sm:$0xff]
  %v588 = vld [vmem:[%s4 + $0x8] sm:$0xff]
  %v589 = vld [vmem:[%s4 + $0x10] sm:$0xff]
  %v590 = vld [vmem:[%s4 + $0x18] sm:$0xff]
  %592 = vset.pattern.permute.xlu0 0
  %593 = vperm.xlu0 %592, %v587
  %v594 = vpop.permute.xlu0 %593
  %597 = vset.pattern.permute.xlu0 0
  %598 = vperm.xlu0 %597, %v588
  %v599 = vpop.permute.xlu0 %598
  %602 = vset.pattern.permute.xlu0 0
  %603 = vperm.xlu0 %602, %v589
  %v604 = vpop.permute.xlu0 %603
  %607 = vset.pattern.permute.xlu0 0
  %608 = vperm.xlu0 %607, %v590
  %v609 = vpop.permute.xlu0 %608
  %v613 = vunpack.c.l.b16 %v585
  %v614 = vunpack.c.l.b16 %v586
  %v615 = vpack.c.b16 %v614, %v613
  %617 = vxpose.xlu0.c.b16.start [1/8] %v615, 128
  %618 = vxpose.xlu0.c.b16.cont [2/8] 0, 128
  %619 = vxpose.xlu0.c.b16.cont [3/8] 0, 128
  %620 = vxpose.xlu0.c.b16.cont [4/8] 0, 128
  %621 = vxpose.xlu0.c.b16.cont [5/8] 0, 128
  %622 = vxpose.xlu0.c.b16.cont [6/8] 0, 128
  %623 = vxpose.xlu0.c.b16.cont [7/8] 0, 128
  %624 = vxpose.xlu0.c.b16.end [8/8] 0, 128
  %v625 = vpop.trf.xlu0
  %v626 = vpop.trf.xlu0
  %v627 = vpop.trf.xlu0
  %v628 = vpop.trf.xlu0
  %v629 = vpop.trf.xlu0
  %v630 = vpop.trf.xlu0
  %v631 = vpop.trf.xlu0
  %v632 = vpop.trf.xlu0
  %vm633 = vcmask 130048
  %v635 = vsel %vm633, %v625, 0
  %v638 = vsel %vm633, %v626, 0
  %640 = vmatprep.subr.bf16.mxu0 %v570
  %641 = vmatpush1.bf16.msra.mxu0 %v569
  %642 = vmatprep.subr.bf16.mxu0 0
  %643 = vmatpush1.bf16.msra.mxu0 0
  %644 = vmatprep.subr.bf16.mxu0 0
  %645 = vmatpush1.bf16.msra.mxu0 0
  %646 = vmatprep.subr.bf16.mxu0 0
  %647 = vmatpush1.bf16.msra.mxu0 0
  %648 = vmatprep.subr.bf16.mxu0 0
  %649 = vmatpush1.bf16.msra.mxu0 0
  %650 = vmatprep.subr.bf16.mxu0 0
  %651 = vmatpush1.bf16.msra.mxu0 0
  %652 = vmatprep.subr.bf16.mxu0 0
  %653 = vmatpush1.bf16.msra.mxu0 0
  %654 = vmatprep.subr.bf16.mxu0 0
  %655 = vmatpush1.bf16.msra.mxu0 0
  %656 = vmatprep.subr.bf16.mxu0 0
  %657 = vmatpush1.bf16.msra.mxu0 0
  %658 = vmatprep.subr.bf16.mxu0 0
  %659 = vmatpush1.bf16.msra.mxu0 0
  %660 = vmatprep.subr.bf16.mxu0 0
  %661 = vmatpush1.bf16.msra.mxu0 0
  %662 = vmatprep.subr.bf16.mxu0 0
  %663 = vmatpush1.bf16.msra.mxu0 0
  %664 = vmatprep.subr.bf16.mxu0 0
  %665 = vmatpush1.bf16.msra.mxu0 0
  %666 = vmatprep.subr.bf16.mxu0 0
  %667 = vmatpush1.bf16.msra.mxu0 0
  %668 = vmatprep.subr.bf16.mxu0 0
  %669 = vmatpush1.bf16.msra.mxu0 0
  %670 = vmatprep.subr.bf16.mxu0 0
  %671 = vmatpush1.bf16.msra.mxu0 0
  %672 = vmatprep.mubr.bf16.mxu0 0
  %673 = vmatmul.mubr.bf16.gmra.mrb[0].mxu0 %v635
  %v674 = vpop.f32.mrb[0].mxu0
  %v675 = vadd.f32 %v594, %v674
  %v676 = vpop.f32.mrb[0].mxu0
  %v677 = vadd.f32 %v594, %v676
  %v678 = vpop.f32.mrb[0].mxu0
  %v679 = vadd.f32 %v599, %v678
  %v680 = vpop.f32.mrb[0].mxu0
  %v681 = vadd.f32 %v599, %v680
  %682 = vmatprep.mubr.bf16.mxu0 0
  %683 = vmatmul.mubr.bf16.gmra.mrb[0].mxu0 %v638
  %v684 = vpop.f32.mrb[0].mxu0
  %v685 = vadd.f32 %v604, %v684
  %v686 = vpop.f32.mrb[0].mxu0
  %v687 = vadd.f32 %v604, %v686
  %v688 = vpop.f32.mrb[0].mxu0
  %v689 = vadd.f32 %v609, %v688
  %v690 = vpop.f32.mrb[0].mxu0
  %v691 = vadd.f32 %v609, %v690
  %692 = vdwg.mxu0
  %693 = vmatprep.subr.bf16.mxu0 %v572
  %694 = vmatpush1.bf16.msra.mxu0 %v571
  %695 = vmatprep.subr.bf16.mxu0 0
  %696 = vmatpush1.bf16.msra.mxu0 0
  %697 = vmatprep.subr.bf16.mxu0 0
  %698 = vmatpush1.bf16.msra.mxu0 0
  %699 = vmatprep.subr.bf16.mxu0 0
  %700 = vmatpush1.bf16.msra.mxu0 0
  %701 = vmatprep.subr.bf16.mxu0 0
  %702 = vmatpush1.bf16.msra.mxu0 0
  %703 = vmatprep.subr.bf16.mxu0 0
  %704 = vmatpush1.bf16.msra.mxu0 0
  %705 = vmatprep.subr.bf16.mxu0 0
  %706 = vmatpush1.bf16.msra.mxu0 0
  %707 = vmatprep.subr.bf16.mxu0 0
  %708 = vmatpush1.bf16.msra.mxu0 0
  %709 = vmatprep.subr.bf16.mxu0 0
  %710 = vmatpush1.bf16.msra.mxu0 0
  %711 = vmatprep.subr.bf16.mxu0 0
  %712 = vmatpush1.bf16.msra.mxu0 0
  %713 = vmatprep.subr.bf16.mxu0 0
  %714 = vmatpush1.bf16.msra.mxu0 0
  %715 = vmatprep.subr.bf16.mxu0 0
  %716 = vmatpush1.bf16.msra.mxu0 0
  %717 = vmatprep.subr.bf16.mxu0 0
  %718 = vmatpush1.bf16.msra.mxu0 0
  %719 = vmatprep.subr.bf16.mxu0 0
  %720 = vmatpush1.bf16.msra.mxu0 0
  %721 = vmatprep.subr.bf16.mxu0 0
  %722 = vmatpush1.bf16.msra.mxu0 0
  %723 = vmatprep.subr.bf16.mxu0 0
  %724 = vmatpush1.bf16.msra.mxu0 0
  %725 = vmatprep.mubr.bf16.mxu0 0
  %726 = vmatmul.mubr.bf16.gmra.mrb[0].mxu0 %v635
  %v727 = vpop.f32.mrb[0].mxu0
  %v728 = vadd.f32 %v594, %v727
  %v729 = vpop.f32.mrb[0].mxu0
  %v730 = vadd.f32 %v594, %v729
  %v731 = vpop.f32.mrb[0].mxu0
  %v732 = vadd.f32 %v599, %v731
  %v733 = vpop.f32.mrb[0].mxu0
  %v734 = vadd.f32 %v599, %v733
  %735 = vmatprep.mubr.bf16.mxu0 0
  %736 = vmatmul.mubr.bf16.gmra.mrb[0].mxu0 %v638
  %v737 = vpop.f32.mrb[0].mxu0
  %v738 = vadd.f32 %v604, %v737
  %v739 = vpop.f32.mrb[0].mxu0
  %v740 = vadd.f32 %v604, %v739
  %v741 = vpop.f32.mrb[0].mxu0
  %v742 = vadd.f32 %v609, %v741
  %v743 = vpop.f32.mrb[0].mxu0
  %v744 = vadd.f32 %v609, %v743
  %745 = vdwg.mxu0
  %746 = vmatprep.subr.bf16.mxu0 %v574
  %747 = vmatpush1.bf16.msra.mxu0 %v573
  %748 = vmatprep.subr.bf16.mxu0 0
  %749 = vmatpush1.bf16.msra.mxu0 0
  %750 = vmatprep.subr.bf16.mxu0 0
  %751 = vmatpush1.bf16.msra.mxu0 0
  %752 = vmatprep.subr.bf16.mxu0 0
  %753 = vmatpush1.bf16.msra.mxu0 0
  %754 = vmatprep.subr.bf16.mxu0 0
  %755 = vmatpush1.bf16.msra.mxu0 0
  %756 = vmatprep.subr.bf16.mxu0 0
  %757 = vmatpush1.bf16.msra.mxu0 0
  %758 = vmatprep.subr.bf16.mxu0 0
  %759 = vmatpush1.bf16.msra.mxu0 0
  %760 = vmatprep.subr.bf16.mxu0 0
  %761 = vmatpush1.bf16.msra.mxu0 0
  %762 = vmatprep.subr.bf16.mxu0 0
  %763 = vmatpush1.bf16.msra.mxu0 0
  %764 = vmatprep.subr.bf16.mxu0 0
  %765 = vmatpush1.bf16.msra.mxu0 0
  %766 = vmatprep.subr.bf16.mxu0 0
  %767 = vmatpush1.bf16.msra.mxu0 0
  %768 = vmatprep.subr.bf16.mxu0 0
  %769 = vmatpush1.bf16.msra.mxu0 0
  %770 = vmatprep.subr.bf16.mxu0 0
  %771 = vmatpush1.bf16.msra.mxu0 0
  %772 = vmatprep.subr.bf16.mxu0 0
  %773 = vmatpush1.bf16.msra.mxu0 0
  %774 = vmatprep.subr.bf16.mxu0 0
  %775 = vmatpush1.bf16.msra.mxu0 0
  %776 = vmatprep.subr.bf16.mxu0 0
  %777 = vmatpush1.bf16.msra.mxu0 0
  %778 = vmatprep.mubr.bf16.mxu0 0
  %779 = vmatmul.mubr.bf16.gmra.mrb[0].mxu0 %v635
  %v780 = vpop.f32.mrb[0].mxu0
  %v781 = vadd.f32 %v594, %v780
  %v782 = vpop.f32.mrb[0].mxu0
  %v783 = vadd.f32 %v594, %v782
  %v784 = vpop.f32.mrb[0].mxu0
  %v785 = vadd.f32 %v599, %v784
  %v786 = vpop.f32.mrb[0].mxu0
  %v787 = vadd.f32 %v599, %v786
  %788 = vmatprep.mubr.bf16.mxu0 0
  %789 = vmatmul.mubr.bf16.gmra.mrb[0].mxu0 %v638
  %v790 = vpop.f32.mrb[0].mxu0
  %v791 = vadd.f32 %v604, %v790
  %v792 = vpop.f32.mrb[0].mxu0
  %v793 = vadd.f32 %v604, %v792
  %v794 = vpop.f32.mrb[0].mxu0
  %v795 = vadd.f32 %v609, %v794
  %v796 = vpop.f32.mrb[0].mxu0
  %v797 = vadd.f32 %v609, %v796
  %798 = vdwg.mxu0
  %799 = vmatprep.subr.bf16.mxu0 %v576
  %800 = vmatpush1.bf16.msra.mxu0 %v575
  %801 = vmatprep.subr.bf16.mxu0 0
  %802 = vmatpush1.bf16.msra.mxu0 0
  %803 = vmatprep.subr.bf16.mxu0 0
  %804 = vmatpush1.bf16.msra.mxu0 0
  %805 = vmatprep.subr.bf16.mxu0 0
  %806 = vmatpush1.bf16.msra.mxu0 0
  %807 = vmatprep.subr.bf16.mxu0 0
  %808 = vmatpush1.bf16.msra.mxu0 0
  %809 = vmatprep.subr.bf16.mxu0 0
  %810 = vmatpush1.bf16.msra.mxu0 0
  %811 = vmatprep.subr.bf16.mxu0 0
  %812 = vmatpush1.bf16.msra.mxu0 0
  %813 = vmatprep.subr.bf16.mxu0 0
  %814 = vmatpush1.bf16.msra.mxu0 0
  %815 = vmatprep.subr.bf16.mxu0 0
  %816 = vmatpush1.bf16.msra.mxu0 0
  %817 = vmatprep.subr.bf16.mxu0 0
  %818 = vmatpush1.bf16.msra.mxu0 0
  %819 = vmatprep.subr.bf16.mxu0 0
  %820 = vmatpush1.bf16.msra.mxu0 0
  %821 = vmatprep.subr.bf16.mxu0 0
  %822 = vmatpush1.bf16.msra.mxu0 0
  %823 = vmatprep.subr.bf16.mxu0 0
  %824 = vmatpush1.bf16.msra.mxu0 0
  %825 = vmatprep.subr.bf16.mxu0 0
  %826 = vmatpush1.bf16.msra.mxu0 0
  %827 = vmatprep.subr.bf16.mxu0 0
  %828 = vmatpush1.bf16.msra.mxu0 0
  %829 = vmatprep.subr.bf16.mxu0 0
  %830 = vmatpush1.bf16.msra.mxu0 0
  %831 = vmatprep.mubr.bf16.mxu0 0
  %832 = vmatmul.mubr.bf16.gmra.mrb[0].mxu0 %v635
  %v833 = vpop.f32.mrb[0].mxu0
  %v834 = vadd.f32 %v594, %v833
  %v835 = vpop.f32.mrb[0].mxu0
  %v836 = vadd.f32 %v594, %v835
  %v837 = vpop.f32.mrb[0].mxu0
  %v838 = vadd.f32 %v599, %v837
  %v839 = vpop.f32.mrb[0].mxu0
  %v840 = vadd.f32 %v599, %v839
  %841 = vmatprep.mubr.bf16.mxu0 0
  %842 = vmatmul.mubr.bf16.gmra.mrb[0].mxu0 %v638
  %v843 = vpop.f32.mrb[0].mxu0
  %v844 = vadd.f32 %v604, %v843
  %v845 = vpop.f32.mrb[0].mxu0
  %v846 = vadd.f32 %v604, %v845
  %v847 = vpop.f32.mrb[0].mxu0
  %v848 = vadd.f32 %v609, %v847
  %v849 = vpop.f32.mrb[0].mxu0
  %v850 = vadd.f32 %v609, %v849
  %851 = vdwg.mxu0
  %852 = vmatprep.subr.bf16.mxu0 %v578
  %853 = vmatpush1.bf16.msra.mxu0 %v577
  %854 = vmatprep.subr.bf16.mxu0 0
  %855 = vmatpush1.bf16.msra.mxu0 0
  %856 = vmatprep.subr.bf16.mxu0 0
  %857 = vmatpush1.bf16.msra.mxu0 0
  %858 = vmatprep.subr.bf16.mxu0 0
  %859 = vmatpush1.bf16.msra.mxu0 0
  %860 = vmatprep.subr.bf16.mxu0 0
  %861 = vmatpush1.bf16.msra.mxu0 0
  %862 = vmatprep.subr.bf16.mxu0 0
  %863 = vmatpush1.bf16.msra.mxu0 0
  %864 = vmatprep.subr.bf16.mxu0 0
  %865 = vmatpush1.bf16.msra.mxu0 0
  %866 = vmatprep.subr.bf16.mxu0 0
  %867 = vmatpush1.bf16.msra.mxu0 0
  %868 = vmatprep.subr.bf16.mxu0 0
  %869 = vmatpush1.bf16.msra.mxu0 0
  %870 = vmatprep.subr.bf16.mxu0 0
  %871 = vmatpush1.bf16.msra.mxu0 0
  %872 = vmatprep.subr.bf16.mxu0 0
  %873 = vmatpush1.bf16.msra.mxu0 0
  %874 = vmatprep.subr.bf16.mxu0 0
  %875 = vmatpush1.bf16.msra.mxu0 0
  %876 = vmatprep.subr.bf16.mxu0 0
  %877 = vmatpush1.bf16.msra.mxu0 0
  %878 = vmatprep.subr.bf16.mxu0 0
  %879 = vmatpush1.bf16.msra.mxu0 0
  %880 = vmatprep.subr.bf16.mxu0 0
  %881 = vmatpush1.bf16.msra.mxu0 0
  %882 = vmatprep.subr.bf16.mxu0 0
  %883 = vmatpush1.bf16.msra.mxu0 0
  %884 = vmatprep.mubr.bf16.mxu0 0
  %885 = vmatmul.mubr.bf16.gmra.mrb[0].mxu0 %v635
  %v886 = vpop.f32.mrb[0].mxu0
  %v887 = vadd.f32 %v594, %v886
  %v888 = vpop.f32.mrb[0].mxu0
  %v889 = vadd.f32 %v594, %v888
  %v890 = vpop.f32.mrb[0].mxu0
  %v891 = vadd.f32 %v599, %v890
  %v892 = vpop.f32.mrb[0].mxu0
  %v893 = vadd.f32 %v599, %v892
  %894 = vmatprep.mubr.bf16.mxu0 0
  %895 = vmatmul.mubr.bf16.gmra.mrb[0].mxu0 %v638
  %v896 = vpop.f32.mrb[0].mxu0
  %v897 = vadd.f32 %v604, %v896
  %v898 = vpop.f32.mrb[0].mxu0
  %v899 = vadd.f32 %v604, %v898
  %v900 = vpop.f32.mrb[0].mxu0
  %v901 = vadd.f32 %v609, %v900
  %v902 = vpop.f32.mrb[0].mxu0
  %v903 = vadd.f32 %v609, %v902
  %904 = vdwg.mxu0
  %905 = vmatprep.subr.bf16.mxu0 %v580
  %906 = vmatpush1.bf16.msra.mxu0 %v579
  %907 = vmatprep.subr.bf16.mxu0 0
  %908 = vmatpush1.bf16.msra.mxu0 0
  %909 = vmatprep.subr.bf16.mxu0 0
  %910 = vmatpush1.bf16.msra.mxu0 0
  %911 = vmatprep.subr.bf16.mxu0 0
  %912 = vmatpush1.bf16.msra.mxu0 0
  %913 = vmatprep.subr.bf16.mxu0 0
  %914 = vmatpush1.bf16.msra.mxu0 0
  %915 = vmatprep.subr.bf16.mxu0 0
  %916 = vmatpush1.bf16.msra.mxu0 0
  %917 = vmatprep.subr.bf16.mxu0 0
  %918 = vmatpush1.bf16.msra.mxu0 0
  %919 = vmatprep.subr.bf16.mxu0 0
  %920 = vmatpush1.bf16.msra.mxu0 0
  %921 = vmatprep.subr.bf16.mxu0 0
  %922 = vmatpush1.bf16.msra.mxu0 0
  %923 = vmatprep.subr.bf16.mxu0 0
  %924 = vmatpush1.bf16.msra.mxu0 0
  %925 = vmatprep.subr.bf16.mxu0 0
  %926 = vmatpush1.bf16.msra.mxu0 0
  %927 = vmatprep.subr.bf16.mxu0 0
  %928 = vmatpush1.bf16.msra.mxu0 0
  %929 = vmatprep.subr.bf16.mxu0 0
  %930 = vmatpush1.bf16.msra.mxu0 0
  %931 = vmatprep.subr.bf16.mxu0 0
  %932 = vmatpush1.bf16.msra.mxu0 0
  %933 = vmatprep.subr.bf16.mxu0 0
  %934 = vmatpush1.bf16.msra.mxu0 0
  %935 = vmatprep.subr.bf16.mxu0 0
  %936 = vmatpush1.bf16.msra.mxu0 0
  %937 = vmatprep.mubr.bf16.mxu0 0
  %938 = vmatmul.mubr.bf16.gmra.mrb[0].mxu0 %v635
  %v939 = vpop.f32.mrb[0].mxu0
  %v940 = vadd.f32 %v594, %v939
  %v941 = vpop.f32.mrb[0].mxu0
  %v942 = vadd.f32 %v594, %v941
  %v943 = vpop.f32.mrb[0].mxu0
  %v944 = vadd.f32 %v599, %v943
  %v945 = vpop.f32.mrb[0].mxu0
  %v946 = vadd.f32 %v599, %v945
  %947 = vmatprep.mubr.bf16.mxu0 0
  %948 = vmatmul.mubr.bf16.gmra.mrb[0].mxu0 %v638
  %v949 = vpop.f32.mrb[0].mxu0
  %v950 = vadd.f32 %v604, %v949
  %v951 = vpop.f32.mrb[0].mxu0
  %v952 = vadd.f32 %v604, %v951
  %v953 = vpop.f32.mrb[0].mxu0
  %v954 = vadd.f32 %v609, %v953
  %v955 = vpop.f32.mrb[0].mxu0
  %v956 = vadd.f32 %v609, %v955
  %957 = vdwg.mxu0
  %958 = vmatprep.subr.bf16.mxu0 %v582
  %959 = vmatpush1.bf16.msra.mxu0 %v581
  %960 = vmatprep.subr.bf16.mxu0 0
  %961 = vmatpush1.bf16.msra.mxu0 0
  %962 = vmatprep.subr.bf16.mxu0 0
  %963 = vmatpush1.bf16.msra.mxu0 0
  %964 = vmatprep.subr.bf16.mxu0 0
  %965 = vmatpush1.bf16.msra.mxu0 0
  %966 = vmatprep.subr.bf16.mxu0 0
  %967 = vmatpush1.bf16.msra.mxu0 0
  %968 = vmatprep.subr.bf16.mxu0 0
  %969 = vmatpush1.bf16.msra.mxu0 0
  %970 = vmatprep.subr.bf16.mxu0 0
  %971 = vmatpush1.bf16.msra.mxu0 0
  %972 = vmatprep.subr.bf16.mxu0 0
  %973 = vmatpush1.bf16.msra.mxu0 0
  %974 = vmatprep.subr.bf16.mxu0 0
  %975 = vmatpush1.bf16.msra.mxu0 0
  %976 = vmatprep.subr.bf16.mxu0 0
  %977 = vmatpush1.bf16.msra.mxu0 0
  %978 = vmatprep.subr.bf16.mxu0 0
  %979 = vmatpush1.bf16.msra.mxu0 0
  %980 = vmatprep.subr.bf16.mxu0 0
  %981 = vmatpush1.bf16.msra.mxu0 0
  %982 = vmatprep.subr.bf16.mxu0 0
  %983 = vmatpush1.bf16.msra.mxu0 0
  %984 = vmatprep.subr.bf16.mxu0 0
  %985 = vmatpush1.bf16.msra.mxu0 0
  %986 = vmatprep.subr.bf16.mxu0 0
  %987 = vmatpush1.bf16.msra.mxu0 0
  %988 = vmatprep.subr.bf16.mxu0 0
  %989 = vmatpush1.bf16.msra.mxu0 0
  %990 = vmatprep.mubr.bf16.mxu0 0
  %991 = vmatmul.mubr.bf16.gmra.mrb[0].mxu0 %v635
  %v992 = vpop.f32.mrb[0].mxu0
  %v993 = vadd.f32 %v594, %v992
  %v994 = vpop.f32.mrb[0].mxu0
  %v995 = vadd.f32 %v594, %v994
  %v996 = vpop.f32.mrb[0].mxu0
  %v997 = vadd.f32 %v599, %v996
  %v998 = vpop.f32.mrb[0].mxu0
  %v999 = vadd.f32 %v599, %v998
  %1000 = vmatprep.mubr.bf16.mxu0 0
  %1001 = vmatmul.mubr.bf16.gmra.mrb[0].mxu0 %v638
  %v1002 = vpop.f32.mrb[0].mxu0
  %v1003 = vadd.f32 %v604, %v1002
  %v1004 = vpop.f32.mrb[0].mxu0
  %v1005 = vadd.f32 %v604, %v1004
  %v1006 = vpop.f32.mrb[0].mxu0
  %v1007 = vadd.f32 %v609, %v1006
  %v1008 = vpop.f32.mrb[0].mxu0
  %v1009 = vadd.f32 %v609, %v1008
  %1010 = vdwg.mxu0
  %1011 = vmatprep.subr.bf16.mxu0 %v584
  %1012 = vmatpush1.bf16.msra.mxu0 %v583
  %1013 = vmatprep.subr.bf16.mxu0 0
  %1014 = vmatpush1.bf16.msra.mxu0 0
  %1015 = vmatprep.subr.bf16.mxu0 0
  %1016 = vmatpush1.bf16.msra.mxu0 0
  %1017 = vmatprep.subr.bf16.mxu0 0
  %1018 = vmatpush1.bf16.msra.mxu0 0
  %1019 = vmatprep.subr.bf16.mxu0 0
  %1020 = vmatpush1.bf16.msra.mxu0 0
  %1021 = vmatprep.subr.bf16.mxu0 0
  %1022 = vmatpush1.bf16.msra.mxu0 0
  %1023 = vmatprep.subr.bf16.mxu0 0
  %1024 = vmatpush1.bf16.msra.mxu0 0
  %1025 = vmatprep.subr.bf16.mxu0 0
  %1026 = vmatpush1.bf16.msra.mxu0 0
  %1027 = vmatprep.subr.bf16.mxu0 0
  %1028 = vmatpush1.bf16.msra.mxu0 0
  %1029 = vmatprep.subr.bf16.mxu0 0
  %1030 = vmatpush1.bf16.msra.mxu0 0
  %1031 = vmatprep.subr.bf16.mxu0 0
  %1032 = vmatpush1.bf16.msra.mxu0 0
  %1033 = vmatprep.subr.bf16.mxu0 0
  %1034 = vmatpush1.bf16.msra.mxu0 0
  %1035 = vmatprep.subr.bf16.mxu0 0
  %1036 = vmatpush1.bf16.msra.mxu0 0
  %1037 = vmatprep.subr.bf16.mxu0 0
  %1038 = vmatpush1.bf16.msra.mxu0 0
  %1039 = vmatprep.subr.bf16.mxu0 0
  %1040 = vmatpush1.bf16.msra.mxu0 0
  %1041 = vmatprep.subr.bf16.mxu0 0
  %1042 = vmatpush1.bf16.msra.mxu0 0
  %1043 = vmatprep.mubr.bf16.mxu0 0
  %1044 = vmatmul.mubr.bf16.gmra.mrb[0].mxu0 %v635
  %v1045 = vpop.f32.mrb[0].mxu0
  %v1046 = vadd.f32 %v594, %v1045
  %v1047 = vpop.f32.mrb[0].mxu0
  %v1048 = vadd.f32 %v594, %v1047
  %v1049 = vpop.f32.mrb[0].mxu0
  %v1050 = vadd.f32 %v599, %v1049
  %v1051 = vpop.f32.mrb[0].mxu0
  %v1052 = vadd.f32 %v599, %v1051
  %1053 = vmatprep.mubr.bf16.mxu0 0
  %1054 = vmatmul.mubr.bf16.gmra.mrb[0].mxu0 %v638
  %v1055 = vpop.f32.mrb[0].mxu0
  %v1056 = vadd.f32 %v604, %v1055
  %v1057 = vpop.f32.mrb[0].mxu0
  %v1058 = vadd.f32 %v604, %v1057
  %v1059 = vpop.f32.mrb[0].mxu0
  %v1060 = vadd.f32 %v609, %v1059
  %v1061 = vpop.f32.mrb[0].mxu0
  %v1062 = vadd.f32 %v609, %v1061
  %1063 = vdwg.mxu0
  %v1064 = vmax.f32 %v675, 0.0
  %v1065 = vmax.f32 %v677, 0.0
  %v1066 = vmax.f32 %v728, 0.0
  %v1067 = vmax.f32 %v730, 0.0
  %v1068 = vmax.f32 %v781, 0.0
  %v1069 = vmax.f32 %v783, 0.0
  %v1070 = vmax.f32 %v834, 0.0
  %v1071 = vmax.f32 %v836, 0.0
  %v1072 = vmax.f32 %v887, 0.0
  %v1073 = vmax.f32 %v889, 0.0
  %v1074 = vmax.f32 %v940, 0.0
  %v1075 = vmax.f32 %v942, 0.0
  %v1076 = vmax.f32 %v993, 0.0
  %v1077 = vmax.f32 %v995, 0.0
  %v1078 = vmax.f32 %v1046, 0.0
  %v1079 = vmax.f32 %v1048, 0.0
  %v1080 = vmax.f32 %v679, 0.0
  %v1081 = vmax.f32 %v681, 0.0
  %v1082 = vmax.f32 %v732, 0.0
  %v1083 = vmax.f32 %v734, 0.0
  %v1084 = vmax.f32 %v785, 0.0
  %v1085 = vmax.f32 %v787, 0.0
  %v1086 = vmax.f32 %v838, 0.0
  %v1087 = vmax.f32 %v840, 0.0
  %v1088 = vmax.f32 %v891, 0.0
  %v1089 = vmax.f32 %v893, 0.0
  %v1090 = vmax.f32 %v944, 0.0
  %v1091 = vmax.f32 %v946, 0.0
  %v1092 = vmax.f32 %v997, 0.0
  %v1093 = vmax.f32 %v999, 0.0
  %v1094 = vmax.f32 %v1050, 0.0
  %v1095 = vmax.f32 %v1052, 0.0
  %v1096 = vmax.f32 %v685, 0.0
  %v1097 = vmax.f32 %v687, 0.0
  %v1098 = vmax.f32 %v738, 0.0
  %v1099 = vmax.f32 %v740, 0.0
  %v1100 = vmax.f32 %v791, 0.0
  %v1101 = vmax.f32 %v793, 0.0
  %v1102 = vmax.f32 %v844, 0.0
  %v1103 = vmax.f32 %v846, 0.0
  %v1104 = vmax.f32 %v897, 0.0
  %v1105 = vmax.f32 %v899, 0.0
  %v1106 = vmax.f32 %v950, 0.0
  %v1107 = vmax.f32 %v952, 0.0
  %v1108 = vmax.f32 %v1003, 0.0
  %v1109 = vmax.f32 %v1005, 0.0
  %v1110 = vmax.f32 %v1056, 0.0
  %v1111 = vmax.f32 %v1058, 0.0
  %v1112 = vmax.f32 %v689, 0.0
  %v1113 = vmax.f32 %v691, 0.0
  %v1114 = vmax.f32 %v742, 0.0
  %v1115 = vmax.f32 %v744, 0.0
  %v1116 = vmax.f32 %v795, 0.0
  %v1117 = vmax.f32 %v797, 0.0
  %v1118 = vmax.f32 %v848, 0.0
  %v1119 = vmax.f32 %v850, 0.0
  %v1120 = vmax.f32 %v901, 0.0
  %v1121 = vmax.f32 %v903, 0.0
  %v1122 = vmax.f32 %v954, 0.0
  %v1123 = vmax.f32 %v956, 0.0
  %v1124 = vmax.f32 %v1007, 0.0
  %v1125 = vmax.f32 %v1009, 0.0
  %v1126 = vmax.f32 %v1060, 0.0
  %v1127 = vmax.f32 %v1062, 0.0
  %v1128 = vmax.f32 %v1064, %v1065
  %v1129 = vmax.f32 %v1080, %v1081
  %v1130 = vmax.f32 %v1096, %v1097
  %v1131 = vmax.f32 %v1112, %v1113
  %v1132 = vmax.f32 %v1128, %v1066
  %v1133 = vmax.f32 %v1129, %v1082
  %v1134 = vmax.f32 %v1130, %v1098
  %v1135 = vmax.f32 %v1131, %v1114
  %v1136 = vmax.f32 %v1132, %v1067
  %v1137 = vmax.f32 %v1133, %v1083
  %v1138 = vmax.f32 %v1134, %v1099
  %v1139 = vmax.f32 %v1135, %v1115
  %v1140 = vmax.f32 %v1136, %v1068
  %v1141 = vmax.f32 %v1137, %v1084
  %v1142 = vmax.f32 %v1138, %v1100
  %v1143 = vmax.f32 %v1139, %v1116
  %v1144 = vmax.f32 %v1140, %v1069
  %v1145 = vmax.f32 %v1141, %v1085
  %v1146 = vmax.f32 %v1142, %v1101
  %v1147 = vmax.f32 %v1143, %v1117
  %v1148 = vmax.f32 %v1144, %v1070
  %v1149 = vmax.f32 %v1145, %v1086
  %v1150 = vmax.f32 %v1146, %v1102
  %v1151 = vmax.f32 %v1147, %v1118
  %v1152 = vmax.f32 %v1148, %v1071
  %v1153 = vmax.f32 %v1149, %v1087
  %v1154 = vmax.f32 %v1150, %v1103
  %v1155 = vmax.f32 %v1151, %v1119
  %v1156 = vmax.f32 %v1152, %v1072
  %v1157 = vmax.f32 %v1153, %v1088
  %v1158 = vmax.f32 %v1154, %v1104
  %v1159 = vmax.f32 %v1155, %v1120
  %v1160 = vmax.f32 %v1156, %v1073
  %v1161 = vmax.f32 %v1157, %v1089
  %v1162 = vmax.f32 %v1158, %v1105
  %v1163 = vmax.f32 %v1159, %v1121
  %v1164 = vmax.f32 %v1160, %v1074
  %v1165 = vmax.f32 %v1161, %v1090
  %v1166 = vmax.f32 %v1162, %v1106
  %v1167 = vmax.f32 %v1163, %v1122
  %v1168 = vmax.f32 %v1164, %v1075
  %v1169 = vmax.f32 %v1165, %v1091
  %v1170 = vmax.f32 %v1166, %v1107
  %v1171 = vmax.f32 %v1167, %v1123
  %v1172 = vmax.f32 %v1168, %v1076
  %v1173 = vmax.f32 %v1169, %v1092
  %v1174 = vmax.f32 %v1170, %v1108
  %v1175 = vmax.f32 %v1171, %v1124
  %v1176 = vmax.f32 %v1172, %v1077
  %v1177 = vmax.f32 %v1173, %v1093
  %v1178 = vmax.f32 %v1174, %v1109
  %v1179 = vmax.f32 %v1175, %v1125
  %v1180 = vmax.f32 %v1176, %v1078
  %v1181 = vmax.f32 %v1177, %v1094
  %v1182 = vmax.f32 %v1178, %v1110
  %v1183 = vmax.f32 %v1179, %v1126
  %v1184 = vmax.f32 %v1180, %v1079
  %v1185 = vmax.f32 %v1181, %v1095
  %v1186 = vmax.f32 %v1182, %v1111
  %v1187 = vmax.f32 %v1183, %v1127
  %1188 = vst [vmem:[%s5] sm:$0xff] %v1184
  %1189 = vst [vmem:[%s5 + $0x8] sm:$0xff] %v1185
  %1190 = vst [vmem:[%s5 + $0x10] sm:$0xff] %v1186
  %1191 = vst [vmem:[%s5 + $0x18] sm:$0xff] %v1187
  // Predicated region
  $region22: #{a_call__.3} parent=0 // pred_check
    _
  $region23: #{a_call__.3} parent=0 // pred_check_branch
    %1193 = sbr.rel (0) target = $region25
  $region24: #{a_call__.3} parent=0 // pred_region
    _
  $region25: #{a_call__.3} parent=0 // pred_fallthru
    _
  // Predicated region
  $region26: #{a_call__.3} parent=0 // pred_check
    _
  $region27: #{a_call__.3} parent=0 // pred_check_branch
    %1195 = sbr.rel (0) target = $region29
  $region28: #{a_call__.3} parent=0 // pred_region
    _
  $region29: #{a_call__.3} parent=0 // pred_fallthru
    _

</llo_original>
